<compile_context>
chip_gen: v7x
topology: tpu7x:2x2x1
jax: 0.10.0
libtpu: 0.0.40
codegen_flags: <defaults>
</compile_context>

<pallas_src>
import numpy as np
import jax
import jax.numpy as jnp
from jax import lax
from jax.experimental import pallas as pl
from jax.experimental.pallas import tpu as pltpu

# ---------------- problem sizes (implied by the module: fc1 expects 2048) --------
B = 2                # batch
C_IN = 16            # in_features
H = W = 14           # AvgPool2d(5, stride=3): 14 -> 4
K, S = 5, 3
OH = OW = (H - K) // S + 1          # 4
CONV_OUT = 128                      # 128 * 4 * 4 = 2048 == fc1 in_features
FC_OUT = 32
NUM_CLASSES = 10
HW = H * W                          # 196
OHW = OH * OW                       # 16
FLAT = CONV_OUT * OHW               # 2048


# ---------------- single fused kernel ---------------------------------------------
def fused_aux_kernel(x_ref, pm_ref, wc_ref, w1_ref, small_ref, o_ref):
    # x_ref:     (B*C_IN, HW)          f32  NCHW input, (batch, channel) folded in rows
    # pm_ref:    (HW, OHW)             f32  avg-pool matrix (1/25 in each 5x5 window)
    # wc_ref:    (C_IN+1, CONV_OUT)    f32  rows 0..C_IN-1: conv weight (BN scale
    #                                       folded, transposed); row C_IN: BN shift
    # w1_ref:    (CONV_OUT, OHW*FC_OUT) bf16 fc1 weight, column index = s*FC_OUT + f
    # small_ref: (FC_OUT+2, FC_OUT)    f32  [0:32,0:10]=fc2_w^T, row 32=fc1_b,
    #                                       row 33[,0:10]=fc2_b
    # o_ref:     (B, NUM_CLASSES)      f32  softmax output

    # ---- average pool: one MXU matmul over the whole batch -----------------------
    pooled = jnp.dot(x_ref[...], pm_ref[...],
                     preferred_element_type=jnp.float32)          # (B*C_IN, OHW)

    # ---- tiny relayout (one small XLU transpose): (b,c,s) -> rows (b,s), cols c --
    pooled_t_all = pooled.T                                       # (OHW, B*C_IN)
    pooled_t = jnp.concatenate(
        [pooled_t_all[:, b * C_IN:(b + 1) * C_IN] for b in range(B)],
        axis=0)                                                   # (B*OHW, C_IN)

    # ---- 1x1 conv (BN scale pre-folded) + BN shift + ReLU -------------------------
    wc = wc_ref[0:C_IN, :]                                        # (C_IN, CONV_OUT)
    shift = wc_ref[C_IN:C_IN + 1, :]                              # (1, CONV_OUT)
    y = jnp.dot(pooled_t, wc, preferred_element_type=jnp.float32) + shift
    y = jnp.maximum(y, 0.0)                                       # (B*OHW, CONV_OUT)
    y3 = y.reshape(B, OHW, CONV_OUT)                              # sublane split only

    # ---- fc1: contract (spatial, channel) with bf16 operands on the MXU ----------
    acc = jnp.zeros((B, FC_OUT), jnp.float32)
    for s in range(OHW):                                          # static unroll (16)
        ys = y3[:, s, :].astype(jnp.bfloat16)                     # (B, CONV_OUT)
        ws = w1_ref[:, s * FC_OUT:(s + 1) * FC_OUT]               # (CONV_OUT, FC_OUT)
        acc = acc + jnp.dot(ys, ws, preferred_element_type=jnp.float32)

    b1 = small_ref[FC_OUT:FC_OUT + 1, :]                          # (1, FC_OUT)
    h = jnp.maximum(acc + b1, 0.0)                                # (B, FC_OUT)

    # ---- fc2 + softmax -------------------------------------------------------------
    w2 = small_ref[0:FC_OUT, 0:NUM_CLASSES]                       # (FC_OUT, NUM_CLASSES)
    b2 = small_ref[FC_OUT + 1:FC_OUT + 2, 0:NUM_CLASSES]          # (1, NUM_CLASSES)
    logits = jnp.dot(h, w2, preferred_element_type=jnp.float32) + b2
    m = jnp.max(logits, axis=1, keepdims=True)
    e = jnp.exp(logits - m)
    o_ref[...] = (e / jnp.sum(e, axis=1, keepdims=True)).astype(o_ref.dtype)


def aux_classifier_forward(x, pool_mat, wc_aug, w1p, small):
    # (B, C, H, W) -> (B*C, HW): contiguous-merge reshape (bitcast, no transpose HLO).
    x_flat = x.reshape(B * C_IN, HW)

    args = (x_flat, pool_mat, wc_aug, w1p, small)
    flops = 2 * (B * C_IN * HW * OHW                 # pooling matmul
                 + (B * OHW) * C_IN * CONV_OUT       # 1x1 conv
                 + B * FLAT * FC_OUT                 # fc1
                 + B * FC_OUT * NUM_CLASSES)         # fc2
    bytes_accessed = int(sum(int(np.prod(a.shape)) * a.dtype.itemsize for a in args)
                         + B * NUM_CLASSES * 4)

    vmem = pl.BlockSpec(memory_space=pltpu.MemorySpace.VMEM)
    return pl.pallas_call(
        fused_aux_kernel,
        out_shape=jax.ShapeDtypeStruct((B, NUM_CLASSES), jnp.float32),
        in_specs=[vmem] * len(args),
        out_specs=vmem,
        cost_estimate=pl.CostEstimate(flops=int(flops),
                                      transcendentals=B * NUM_CLASSES,
                                      bytes_accessed=bytes_accessed),
    )(*args)


# ---------------- host-side parameter preparation ----------------------------------
def prepare_params(params):
    (pool_mat, conv_w, bn_scale, bn_shift, fc1_w, fc1_b, fc2_w, fc2_b) = params

    # 1x1 conv weight with BN (eval-mode) scale folded in, transposed so CONV_OUT
    # lands on the lane axis; BN shift appended as one extra row -> single DMA.
    wc_t = (conv_w * bn_scale[:, None]).T                          # (C_IN, CONV_OUT)
    wc_aug = jnp.concatenate([wc_t, bn_shift.reshape(1, CONV_OUT)], axis=0)

    # fc1 weight: PyTorch flatten order is (c*OHW + s); store lane-dense as
    # (CONV_OUT, OHW*FC_OUT) with column index s*FC_OUT + f.  Stays bf16.
    w1p = jnp.transpose(fc1_w.reshape(FC_OUT, CONV_OUT, OHW),
                        (1, 2, 0)).reshape(CONV_OUT, OHW * FC_OUT)

    # fc2 weight + both biases packed into one small lane-aligned array.
    small = jnp.zeros((FC_OUT + 2, FC_OUT), jnp.float32)
    small = small.at[0:FC_OUT, 0:NUM_CLASSES].set(fc2_w.T)
    small = small.at[FC_OUT, :].set(fc1_b)
    small = small.at[FC_OUT + 1, 0:NUM_CLASSES].set(fc2_b)

    return (pool_mat, wc_aug, w1p, small)


# ---------------- pure-JAX reference for verification ------------------------------
def reference_forward(x, params):
    (_, conv_w, bn_scale, bn_shift, fc1_w, fc1_b, fc2_w, fc2_b) = params
    pooled = lax.reduce_window(x, 0.0, lax.add,
                               (1, 1, K, K), (1, 1, S, S), "VALID") / float(K * K)
    y = jnp.einsum("oc,bchw->bohw", conv_w, pooled,
                   precision=lax.Precision.HIGHEST)
    y = y * bn_scale[None, :, None, None] + bn_shift[None, :, None, None]
    y = jnp.maximum(y, 0.0)
    flat = y.reshape(B, -1)
    # The kernel feeds bf16 activations/weights to the MXU for fc1 (f32 accumulate);
    # mirror the bf16 rounding here so the check stays meaningful and tight.
    flat_b = flat.astype(jnp.bfloat16).astype(jnp.float32)
    w1 = fc1_w.astype(jnp.float32)                                 # fc1_w is bf16
    h = jnp.maximum(jnp.dot(flat_b, w1.T, precision=lax.Precision.HIGHEST) + fc1_b, 0.0)
    logits = jnp.dot(h, fc2_w.T, precision=lax.Precision.HIGHEST) + fc2_b
    return jax.nn.softmax(logits, axis=1)


def make_params():
    key = jax.random.PRNGKey(0)
    ks = jax.random.split(key, 9)
    conv_w = jax.random.normal(ks[0], (CONV_OUT, C_IN), jnp.float32) * 0.1
    bn_gamma = jax.random.uniform(ks[1], (CONV_OUT,), jnp.float32, 0.5, 1.5)
    bn_beta = jax.random.normal(ks[2], (CONV_OUT,), jnp.float32) * 0.1
    bn_mean = jax.random.normal(ks[3], (CONV_OUT,), jnp.float32) * 0.1
    bn_var = jax.random.uniform(ks[4], (CONV_OUT,), jnp.float32, 0.5, 1.5)
    eps = 1e-5
    # BatchNorm in eval mode (running stats), folded into per-channel affine.
    bn_scale = bn_gamma / jnp.sqrt(bn_var + eps)
    bn_shift = bn_beta - bn_mean * bn_scale
    # fc1 weight stored in bf16 (halves the dominant HBM transfer); kernel and
    # reference both use these bf16-rounded values.
    fc1_w = (jax.random.normal(ks[5], (FC_OUT, FLAT), jnp.float32) * 0.05
             ).astype(jnp.bfloat16)
    fc1_b = jax.random.normal(ks[6], (FC_OUT,), jnp.float32) * 0.05
    fc2_w = jax.random.normal(ks[7], (NUM_CLASSES, FC_OUT), jnp.float32) * 0.05
    fc2_b = jax.random.normal(ks[8], (NUM_CLASSES,), jnp.float32) * 0.05

    # Constant avg-pool matrix [H*W, OH*OW]: each column averages its 5x5 window.
    pm = np.zeros((HW, OHW), dtype=np.float32)
    for oh in range(OH):
        for ow in range(OW):
            for i in range(K):
                for j in range(K):
                    pm[(oh * S + i) * W + (ow * S + j), oh * OW + ow] = 1.0 / (K * K)
    pool_mat = jnp.asarray(pm)

    return (pool_mat, conv_w, bn_scale, bn_shift, fc1_w, fc1_b, fc2_w, fc2_b)


if __name__ == "__main__":
    params = make_params()
    x = jax.random.normal(jax.random.split(jax.random.PRNGKey(0), 2)[1],
                          (B, C_IN, H, W), jnp.float32)
    pool_mat, wc_aug, w1p, small = prepare_params(params)

    fwd = jax.jit(aux_classifier_forward)
    out = jax.block_until_ready(fwd(x, pool_mat, wc_aug, w1p, small))
    ref = jax.block_until_ready(reference_forward(x, params))

    assert out.shape == (B, NUM_CLASSES)
    # Tolerance covers matmul-precision differences (MXU f32 path vs XLA defaults)
    # on the pooling/conv contractions; any indexing/permutation bug would be far off.
    np.testing.assert_allclose(np.asarray(out), np.asarray(ref), rtol=2e-2, atol=1e-3)
    np.testing.assert_allclose(np.asarray(out).sum(axis=1), np.ones(B),
                               rtol=1e-5, atol=1e-5)
    print("KERNEL_OK")
</pallas_src>

<mosaic_0001>
module attributes {stable_mosaic.version = 11 : i64} {
  func.func @fused_aux_kernel(%arg0: memref<32x196xf32, #tpu.memory_space<vmem>>, %arg1: memref<196x16xf32, #tpu.memory_space<vmem>>, %arg2: memref<17x128xf32, #tpu.memory_space<vmem>>, %arg3: memref<128x512xbf16, #tpu.memory_space<vmem>>, %arg4: memref<34x32xf32, #tpu.memory_space<vmem>>, %arg5: memref<2x10xf32, #tpu.memory_space<vmem>>) attributes {dimension_semantics = [], scalar_prefetch = 0 : i64, scratch_operands = 0 : i64, tpu.core_type = #tpu.core_type<tc>} {
    %c0 = arith.constant 0 : index
    %c0_0 = arith.constant 0 : index
    %0 = vector.load %arg0[%c0, %c0_0] : memref<32x196xf32, #tpu.memory_space<vmem>>, vector<32x196xf32>
    %c0_1 = arith.constant 0 : index
    %c0_2 = arith.constant 0 : index
    %1 = vector.load %arg1[%c0_1, %c0_2] : memref<196x16xf32, #tpu.memory_space<vmem>>, vector<196x16xf32>
    %cst = arith.constant dense<0.000000e+00> : vector<32x16xf32>
    %2 = tpu.matmul %0, %1, %cst {dimension_numbers = #tpu.dot_dimension_numbers<[1], [0], [0], [1], [0, 0, 1, 1], [], []>} : vector<32x196xf32>, vector<196x16xf32>, vector<32x16xf32> -> vector<32x16xf32>
    %3 = tpu.transpose %2, [1, 0] : vector<32x16xf32> -> vector<16x32xf32>
    %4 = vector.extract_strided_slice %3 {offsets = [0, 0], sizes = [16, 16], strides = [1, 1]} : vector<16x32xf32> to vector<16x16xf32>
    %5 = vector.extract_strided_slice %3 {offsets = [0, 16], sizes = [16, 16], strides = [1, 1]} : vector<16x32xf32> to vector<16x16xf32>
    %6 = tpu.concatenate %4, %5 in 0 : vector<16x16xf32>, vector<16x16xf32> -> vector<32x16xf32>
    %c0_3 = arith.constant 0 : index
    %c0_4 = arith.constant 0 : index
    %7 = vector.load %arg2[%c0_3, %c0_4] : memref<17x128xf32, #tpu.memory_space<vmem>>, vector<16x128xf32>
    %c16 = arith.constant 16 : index
    %c0_5 = arith.constant 0 : index
    %8 = vector.load %arg2[%c16, %c0_5] : memref<17x128xf32, #tpu.memory_space<vmem>>, vector<1x128xf32>
    %cst_6 = arith.constant dense<0.000000e+00> : vector<32x128xf32>
    %9 = tpu.matmul %6, %7, %cst_6 {dimension_numbers = #tpu.dot_dimension_numbers<[1], [0], [0], [1], [0, 0, 1, 1], [], []>} : vector<32x16xf32>, vector<16x128xf32>, vector<32x128xf32> -> vector<32x128xf32>
    %10 = vector.broadcast %8 : vector<1x128xf32> to vector<32x128xf32>
    %11 = arith.addf %9, %10 : vector<32x128xf32>
    %cst_7 = arith.constant 0.000000e+00 : f32
    %12 = vector.broadcast %cst_7 : f32 to vector<32x128xf32>
    %13 = arith.maximumf %11, %12 : vector<32x128xf32>
    %14 = vector.shape_cast %13 : vector<32x128xf32> to vector<2x16x128xf32>
    %cst_8 = arith.constant 0.000000e+00 : f32
    %15 = vector.broadcast %cst_8 : f32 to vector<2x32xf32>
    %16 = vector.extract_strided_slice %14 {offsets = [0, 0, 0], sizes = [2, 1, 128], strides = [1, 1, 1]} : vector<2x16x128xf32> to vector<2x1x128xf32>
    %17 = vector.shape_cast %16 : vector<2x1x128xf32> to vector<2x128xf32>
    %18 = arith.truncf %17 : vector<2x128xf32> to vector<2x128xbf16>
    %c0_9 = arith.constant 0 : index
    %c0_10 = arith.constant 0 : index
    %19 = vector.load %arg3[%c0_9, %c0_10] : memref<128x512xbf16, #tpu.memory_space<vmem>>, vector<128x32xbf16>
    %cst_11 = arith.constant dense<0.000000e+00> : vector<2x32xf32>
    %20 = tpu.matmul %18, %19, %cst_11 {dimension_numbers = #tpu.dot_dimension_numbers<[1], [0], [0], [1], [0, 0, 1, 1], [], []>} : vector<2x128xbf16>, vector<128x32xbf16>, vector<2x32xf32> -> vector<2x32xf32>
    %21 = arith.addf %15, %20 : vector<2x32xf32>
    %22 = vector.extract_strided_slice %14 {offsets = [0, 1, 0], sizes = [2, 1, 128], strides = [1, 1, 1]} : vector<2x16x128xf32> to vector<2x1x128xf32>
    %23 = vector.shape_cast %22 : vector<2x1x128xf32> to vector<2x128xf32>
    %24 = arith.truncf %23 : vector<2x128xf32> to vector<2x128xbf16>
    %c0_12 = arith.constant 0 : index
    %c32 = arith.constant 32 : index
    %25 = vector.load %arg3[%c0_12, %c32] : memref<128x512xbf16, #tpu.memory_space<vmem>>, vector<128x32xbf16>
    %cst_13 = arith.constant dense<0.000000e+00> : vector<2x32xf32>
    %26 = tpu.matmul %24, %25, %cst_13 {dimension_numbers = #tpu.dot_dimension_numbers<[1], [0], [0], [1], [0, 0, 1, 1], [], []>} : vector<2x128xbf16>, vector<128x32xbf16>, vector<2x32xf32> -> vector<2x32xf32>
    %27 = arith.addf %21, %26 : vector<2x32xf32>
    %28 = vector.extract_strided_slice %14 {offsets = [0, 2, 0], sizes = [2, 1, 128], strides = [1, 1, 1]} : vector<2x16x128xf32> to vector<2x1x128xf32>
    %29 = vector.shape_cast %28 : vector<2x1x128xf32> to vector<2x128xf32>
    %30 = arith.truncf %29 : vector<2x128xf32> to vector<2x128xbf16>
    %c0_14 = arith.constant 0 : index
    %c64 = arith.constant 64 : index
    %31 = vector.load %arg3[%c0_14, %c64] : memref<128x512xbf16, #tpu.memory_space<vmem>>, vector<128x32xbf16>
    %cst_15 = arith.constant dense<0.000000e+00> : vector<2x32xf32>
    %32 = tpu.matmul %30, %31, %cst_15 {dimension_numbers = #tpu.dot_dimension_numbers<[1], [0], [0], [1], [0, 0, 1, 1], [], []>} : vector<2x128xbf16>, vector<128x32xbf16>, vector<2x32xf32> -> vector<2x32xf32>
    %33 = arith.addf %27, %32 : vector<2x32xf32>
    %34 = vector.extract_strided_slice %14 {offsets = [0, 3, 0], sizes = [2, 1, 128], strides = [1, 1, 1]} : vector<2x16x128xf32> to vector<2x1x128xf32>
    %35 = vector.shape_cast %34 : vector<2x1x128xf32> to vector<2x128xf32>
    %36 = arith.truncf %35 : vector<2x128xf32> to vector<2x128xbf16>
    %c0_16 = arith.constant 0 : index
    %c96 = arith.constant 96 : index
    %37 = vector.load %arg3[%c0_16, %c96] : memref<128x512xbf16, #tpu.memory_space<vmem>>, vector<128x32xbf16>
    %cst_17 = arith.constant dense<0.000000e+00> : vector<2x32xf32>
    %38 = tpu.matmul %36, %37, %cst_17 {dimension_numbers = #tpu.dot_dimension_numbers<[1], [0], [0], [1], [0, 0, 1, 1], [], []>} : vector<2x128xbf16>, vector<128x32xbf16>, vector<2x32xf32> -> vector<2x32xf32>
    %39 = arith.addf %33, %38 : vector<2x32xf32>
    %40 = vector.extract_strided_slice %14 {offsets = [0, 4, 0], sizes = [2, 1, 128], strides = [1, 1, 1]} : vector<2x16x128xf32> to vector<2x1x128xf32>
    %41 = vector.shape_cast %40 : vector<2x1x128xf32> to vector<2x128xf32>
    %42 = arith.truncf %41 : vector<2x128xf32> to vector<2x128xbf16>
    %c0_18 = arith.constant 0 : index
    %c128 = arith.constant 128 : index
    %43 = vector.load %arg3[%c0_18, %c128] : memref<128x512xbf16, #tpu.memory_space<vmem>>, vector<128x32xbf16>
    %cst_19 = arith.constant dense<0.000000e+00> : vector<2x32xf32>
    %44 = tpu.matmul %42, %43, %cst_19 {dimension_numbers = #tpu.dot_dimension_numbers<[1], [0], [0], [1], [0, 0, 1, 1], [], []>} : vector<2x128xbf16>, vector<128x32xbf16>, vector<2x32xf32> -> vector<2x32xf32>
    %45 = arith.addf %39, %44 : vector<2x32xf32>
    %46 = vector.extract_strided_slice %14 {offsets = [0, 5, 0], sizes = [2, 1, 128], strides = [1, 1, 1]} : vector<2x16x128xf32> to vector<2x1x128xf32>
    %47 = vector.shape_cast %46 : vector<2x1x128xf32> to vector<2x128xf32>
    %48 = arith.truncf %47 : vector<2x128xf32> to vector<2x128xbf16>
    %c0_20 = arith.constant 0 : index
    %c160 = arith.constant 160 : index
    %49 = vector.load %arg3[%c0_20, %c160] : memref<128x512xbf16, #tpu.memory_space<vmem>>, vector<128x32xbf16>
    %cst_21 = arith.constant dense<0.000000e+00> : vector<2x32xf32>
    %50 = tpu.matmul %48, %49, %cst_21 {dimension_numbers = #tpu.dot_dimension_numbers<[1], [0], [0], [1], [0, 0, 1, 1], [], []>} : vector<2x128xbf16>, vector<128x32xbf16>, vector<2x32xf32> -> vector<2x32xf32>
    %51 = arith.addf %45, %50 : vector<2x32xf32>
    %52 = vector.extract_strided_slice %14 {offsets = [0, 6, 0], sizes = [2, 1, 128], strides = [1, 1, 1]} : vector<2x16x128xf32> to vector<2x1x128xf32>
    %53 = vector.shape_cast %52 : vector<2x1x128xf32> to vector<2x128xf32>
    %54 = arith.truncf %53 : vector<2x128xf32> to vector<2x128xbf16>
    %c0_22 = arith.constant 0 : index
    %c192 = arith.constant 192 : index
    %55 = vector.load %arg3[%c0_22, %c192] : memref<128x512xbf16, #tpu.memory_space<vmem>>, vector<128x32xbf16>
    %cst_23 = arith.constant dense<0.000000e+00> : vector<2x32xf32>
    %56 = tpu.matmul %54, %55, %cst_23 {dimension_numbers = #tpu.dot_dimension_numbers<[1], [0], [0], [1], [0, 0, 1, 1], [], []>} : vector<2x128xbf16>, vector<128x32xbf16>, vector<2x32xf32> -> vector<2x32xf32>
    %57 = arith.addf %51, %56 : vector<2x32xf32>
    %58 = vector.extract_strided_slice %14 {offsets = [0, 7, 0], sizes = [2, 1, 128], strides = [1, 1, 1]} : vector<2x16x128xf32> to vector<2x1x128xf32>
    %59 = vector.shape_cast %58 : vector<2x1x128xf32> to vector<2x128xf32>
    %60 = arith.truncf %59 : vector<2x128xf32> to vector<2x128xbf16>
    %c0_24 = arith.constant 0 : index
    %c224 = arith.constant 224 : index
    %61 = vector.load %arg3[%c0_24, %c224] : memref<128x512xbf16, #tpu.memory_space<vmem>>, vector<128x32xbf16>
    %cst_25 = arith.constant dense<0.000000e+00> : vector<2x32xf32>
    %62 = tpu.matmul %60, %61, %cst_25 {dimension_numbers = #tpu.dot_dimension_numbers<[1], [0], [0], [1], [0, 0, 1, 1], [], []>} : vector<2x128xbf16>, vector<128x32xbf16>, vector<2x32xf32> -> vector<2x32xf32>
    %63 = arith.addf %57, %62 : vector<2x32xf32>
    %64 = vector.extract_strided_slice %14 {offsets = [0, 8, 0], sizes = [2, 1, 128], strides = [1, 1, 1]} : vector<2x16x128xf32> to vector<2x1x128xf32>
    %65 = vector.shape_cast %64 : vector<2x1x128xf32> to vector<2x128xf32>
    %66 = arith.truncf %65 : vector<2x128xf32> to vector<2x128xbf16>
    %c0_26 = arith.constant 0 : index
    %c256 = arith.constant 256 : index
    %67 = vector.load %arg3[%c0_26, %c256] : memref<128x512xbf16, #tpu.memory_space<vmem>>, vector<128x32xbf16>
    %cst_27 = arith.constant dense<0.000000e+00> : vector<2x32xf32>
    %68 = tpu.matmul %66, %67, %cst_27 {dimension_numbers = #tpu.dot_dimension_numbers<[1], [0], [0], [1], [0, 0, 1, 1], [], []>} : vector<2x128xbf16>, vector<128x32xbf16>, vector<2x32xf32> -> vector<2x32xf32>
    %69 = arith.addf %63, %68 : vector<2x32xf32>
    %70 = vector.extract_strided_slice %14 {offsets = [0, 9, 0], sizes = [2, 1, 128], strides = [1, 1, 1]} : vector<2x16x128xf32> to vector<2x1x128xf32>
    %71 = vector.shape_cast %70 : vector<2x1x128xf32> to vector<2x128xf32>
    %72 = arith.truncf %71 : vector<2x128xf32> to vector<2x128xbf16>
    %c0_28 = arith.constant 0 : index
    %c288 = arith.constant 288 : index
    %73 = vector.load %arg3[%c0_28, %c288] : memref<128x512xbf16, #tpu.memory_space<vmem>>, vector<128x32xbf16>
    %cst_29 = arith.constant dense<0.000000e+00> : vector<2x32xf32>
    %74 = tpu.matmul %72, %73, %cst_29 {dimension_numbers = #tpu.dot_dimension_numbers<[1], [0], [0], [1], [0, 0, 1, 1], [], []>} : vector<2x128xbf16>, vector<128x32xbf16>, vector<2x32xf32> -> vector<2x32xf32>
    %75 = arith.addf %69, %74 : vector<2x32xf32>
    %76 = vector.extract_strided_slice %14 {offsets = [0, 10, 0], sizes = [2, 1, 128], strides = [1, 1, 1]} : vector<2x16x128xf32> to vector<2x1x128xf32>
    %77 = vector.shape_cast %76 : vector<2x1x128xf32> to vector<2x128xf32>
    %78 = arith.truncf %77 : vector<2x128xf32> to vector<2x128xbf16>
    %c0_30 = arith.constant 0 : index
    %c320 = arith.constant 320 : index
    %79 = vector.load %arg3[%c0_30, %c320] : memref<128x512xbf16, #tpu.memory_space<vmem>>, vector<128x32xbf16>
    %cst_31 = arith.constant dense<0.000000e+00> : vector<2x32xf32>
    %80 = tpu.matmul %78, %79, %cst_31 {dimension_numbers = #tpu.dot_dimension_numbers<[1], [0], [0], [1], [0, 0, 1, 1], [], []>} : vector<2x128xbf16>, vector<128x32xbf16>, vector<2x32xf32> -> vector<2x32xf32>
    %81 = arith.addf %75, %80 : vector<2x32xf32>
    %82 = vector.extract_strided_slice %14 {offsets = [0, 11, 0], sizes = [2, 1, 128], strides = [1, 1, 1]} : vector<2x16x128xf32> to vector<2x1x128xf32>
    %83 = vector.shape_cast %82 : vector<2x1x128xf32> to vector<2x128xf32>
    %84 = arith.truncf %83 : vector<2x128xf32> to vector<2x128xbf16>
    %c0_32 = arith.constant 0 : index
    %c352 = arith.constant 352 : index
    %85 = vector.load %arg3[%c0_32, %c352] : memref<128x512xbf16, #tpu.memory_space<vmem>>, vector<128x32xbf16>
    %cst_33 = arith.constant dense<0.000000e+00> : vector<2x32xf32>
    %86 = tpu.matmul %84, %85, %cst_33 {dimension_numbers = #tpu.dot_dimension_numbers<[1], [0], [0], [1], [0, 0, 1, 1], [], []>} : vector<2x128xbf16>, vector<128x32xbf16>, vector<2x32xf32> -> vector<2x32xf32>
    %87 = arith.addf %81, %86 : vector<2x32xf32>
    %88 = vector.extract_strided_slice %14 {offsets = [0, 12, 0], sizes = [2, 1, 128], strides = [1, 1, 1]} : vector<2x16x128xf32> to vector<2x1x128xf32>
    %89 = vector.shape_cast %88 : vector<2x1x128xf32> to vector<2x128xf32>
    %90 = arith.truncf %89 : vector<2x128xf32> to vector<2x128xbf16>
    %c0_34 = arith.constant 0 : index
    %c384 = arith.constant 384 : index
    %91 = vector.load %arg3[%c0_34, %c384] : memref<128x512xbf16, #tpu.memory_space<vmem>>, vector<128x32xbf16>
    %cst_35 = arith.constant dense<0.000000e+00> : vector<2x32xf32>
    %92 = tpu.matmul %90, %91, %cst_35 {dimension_numbers = #tpu.dot_dimension_numbers<[1], [0], [0], [1], [0, 0, 1, 1], [], []>} : vector<2x128xbf16>, vector<128x32xbf16>, vector<2x32xf32> -> vector<2x32xf32>
    %93 = arith.addf %87, %92 : vector<2x32xf32>
    %94 = vector.extract_strided_slice %14 {offsets = [0, 13, 0], sizes = [2, 1, 128], strides = [1, 1, 1]} : vector<2x16x128xf32> to vector<2x1x128xf32>
    %95 = vector.shape_cast %94 : vector<2x1x128xf32> to vector<2x128xf32>
    %96 = arith.truncf %95 : vector<2x128xf32> to vector<2x128xbf16>
    %c0_36 = arith.constant 0 : index
    %c416 = arith.constant 416 : index
    %97 = vector.load %arg3[%c0_36, %c416] : memref<128x512xbf16, #tpu.memory_space<vmem>>, vector<128x32xbf16>
    %cst_37 = arith.constant dense<0.000000e+00> : vector<2x32xf32>
    %98 = tpu.matmul %96, %97, %cst_37 {dimension_numbers = #tpu.dot_dimension_numbers<[1], [0], [0], [1], [0, 0, 1, 1], [], []>} : vector<2x128xbf16>, vector<128x32xbf16>, vector<2x32xf32> -> vector<2x32xf32>
    %99 = arith.addf %93, %98 : vector<2x32xf32>
    %100 = vector.extract_strided_slice %14 {offsets = [0, 14, 0], sizes = [2, 1, 128], strides = [1, 1, 1]} : vector<2x16x128xf32> to vector<2x1x128xf32>
    %101 = vector.shape_cast %100 : vector<2x1x128xf32> to vector<2x128xf32>
    %102 = arith.truncf %101 : vector<2x128xf32> to vector<2x128xbf16>
    %c0_38 = arith.constant 0 : index
    %c448 = arith.constant 448 : index
    %103 = vector.load %arg3[%c0_38, %c448] : memref<128x512xbf16, #tpu.memory_space<vmem>>, vector<128x32xbf16>
    %cst_39 = arith.constant dense<0.000000e+00> : vector<2x32xf32>
    %104 = tpu.matmul %102, %103, %cst_39 {dimension_numbers = #tpu.dot_dimension_numbers<[1], [0], [0], [1], [0, 0, 1, 1], [], []>} : vector<2x128xbf16>, vector<128x32xbf16>, vector<2x32xf32> -> vector<2x32xf32>
    %105 = arith.addf %99, %104 : vector<2x32xf32>
    %106 = vector.extract_strided_slice %14 {offsets = [0, 15, 0], sizes = [2, 1, 128], strides = [1, 1, 1]} : vector<2x16x128xf32> to vector<2x1x128xf32>
    %107 = vector.shape_cast %106 : vector<2x1x128xf32> to vector<2x128xf32>
    %108 = arith.truncf %107 : vector<2x128xf32> to vector<2x128xbf16>
    %c0_40 = arith.constant 0 : index
    %c480 = arith.constant 480 : index
    %109 = vector.load %arg3[%c0_40, %c480] : memref<128x512xbf16, #tpu.memory_space<vmem>>, vector<128x32xbf16>
    %cst_41 = arith.constant dense<0.000000e+00> : vector<2x32xf32>
    %110 = tpu.matmul %108, %109, %cst_41 {dimension_numbers = #tpu.dot_dimension_numbers<[1], [0], [0], [1], [0, 0, 1, 1], [], []>} : vector<2x128xbf16>, vector<128x32xbf16>, vector<2x32xf32> -> vector<2x32xf32>
    %111 = arith.addf %105, %110 : vector<2x32xf32>
    %c32_42 = arith.constant 32 : index
    %c0_43 = arith.constant 0 : index
    %112 = vector.load %arg4[%c32_42, %c0_43] : memref<34x32xf32, #tpu.memory_space<vmem>>, vector<1x32xf32>
    %113 = vector.broadcast %112 : vector<1x32xf32> to vector<2x32xf32>
    %114 = arith.addf %111, %113 : vector<2x32xf32>
    %cst_44 = arith.constant 0.000000e+00 : f32
    %115 = vector.broadcast %cst_44 : f32 to vector<2x32xf32>
    %116 = arith.maximumf %114, %115 : vector<2x32xf32>
    %c0_45 = arith.constant 0 : index
    %c0_46 = arith.constant 0 : index
    %117 = vector.load %arg4[%c0_45, %c0_46] : memref<34x32xf32, #tpu.memory_space<vmem>>, vector<32x10xf32>
    %c33 = arith.constant 33 : index
    %c0_47 = arith.constant 0 : index
    %118 = vector.load %arg4[%c33, %c0_47] : memref<34x32xf32, #tpu.memory_space<vmem>>, vector<1x10xf32>
    %cst_48 = arith.constant dense<0.000000e+00> : vector<2x10xf32>
    %119 = tpu.matmul %116, %117, %cst_48 {dimension_numbers = #tpu.dot_dimension_numbers<[1], [0], [0], [1], [0, 0, 1, 1], [], []>} : vector<2x32xf32>, vector<32x10xf32>, vector<2x10xf32> -> vector<2x10xf32>
    %120 = vector.broadcast %118 : vector<1x10xf32> to vector<2x10xf32>
    %121 = arith.addf %119, %120 : vector<2x10xf32>
    %cst_49 = arith.constant dense<0xFF800000> : vector<2xf32>
    %122 = vector.multi_reduction <maximumf>, %121, %cst_49 [1] : vector<2x10xf32> to vector<2xf32>
    %123 = vector.shape_cast %122 : vector<2xf32> to vector<2x1xf32>
    %124 = vector.broadcast %123 : vector<2x1xf32> to vector<2x10xf32>
    %125 = arith.subf %121, %124 : vector<2x10xf32>
    %126 = math.exp %125 : vector<2x10xf32>
    %cst_50 = arith.constant dense<0.000000e+00> : vector<2xf32>
    %127 = vector.multi_reduction <add>, %126, %cst_50 [1] : vector<2x10xf32> to vector<2xf32>
    %128 = vector.shape_cast %127 : vector<2xf32> to vector<2x1xf32>
    %129 = vector.broadcast %128 : vector<2x1xf32> to vector<2x10xf32>
    %130 = arith.divf %126, %129 : vector<2x10xf32>
    %c0_51 = arith.constant 0 : index
    %c0_52 = arith.constant 0 : index
    %131 = vector.load %arg5[%c0_51, %c0_52] : memref<2x10xf32, #tpu.memory_space<vmem>>, vector<2x10xf32>
    tpu.vector_store %arg5[%c0_51, %c0_52], %130 {strides = array<i32>} : memref<2x10xf32, #tpu.memory_space<vmem>>, vector<2x10xf32>,
    return
  }
}

</mosaic_0001>

<llo_original>
// kernel: aux_classifier_forward.1
$region0: #{aux_classifier_forward.1}
  #allocation0 [shape = 'u32[]', space=smem, size = 0x4, offset = 0x4, fixed_abs, tag = 'smem constant byte address 0x4 - core index']
  #allocation1 [shape = 'u32[144,128]{1,0:T(1,128)}', space=vmem, size = 0x12000, scoped, tag = 'internal scratch']
  %s0 = inlined_call_operand.vmem [shape: f32[32,196], index: 0, kind: input, shape index: {}]
  %s1 = inlined_call_operand.vmem [shape: f32[196,16], index: 1, kind: input, shape index: {}]
  %s2 = inlined_call_operand.vmem [shape: f32[17,128], index: 2, kind: input, shape index: {}]
  %s3 = inlined_call_operand.vmem [shape: bf16[128,512], index: 3, kind: input, shape index: {}]
  %s4 = inlined_call_operand.vmem [shape: f32[34,32], index: 4, kind: input, shape index: {}]
  %s5 = inlined_call_operand.hbm [shape: f32[2,10], index: 5, kind: output, shape index: {}]
  %s6 = sld [smem:[#allocation0]]
  $region30: #{aux_classifier_forward.1} parent=0
    _
  %s8 = ssub.s32 1, %s6
  %s9 = scalar_select 0, %s8, %s6
  $region1: #{aux_classifier_forward.1} parent=0
    #allocation2 [shape = 'u8[1024]{0}', space=vmem, size = 0x400, scoped, tag = 'output window, operand 0, single buffered']
    #allocation3 [shape = 's32[1]{0}', space=sflag, size = 0x4, scoped, tag = 'scoped memory for aux_classifier_forward.1']
    %10 = vsyncpa [#allocation3], 0
    // Predicated region
    $region2: #{aux_classifier_forward.1} parent=1 // pred_check
      _
    $region3: #{aux_classifier_forward.1} parent=1 // pred_check_branch
      %12 = sbr.rel (0) target = $region5
    $region4: #{aux_classifier_forward.1} parent=1 // pred_region
      _
    $region5: #{aux_classifier_forward.1} parent=1 // pred_fallthru
      _
    // Predicated region
    $region6: #{aux_classifier_forward.1} parent=1 // pred_check
      _
    $region7: #{aux_classifier_forward.1} parent=1 // pred_check_branch
      %14 = sbr.rel (0) target = $region9
    $region8: #{aux_classifier_forward.1} parent=1 // pred_region
      _
    $region9: #{aux_classifier_forward.1} parent=1 // pred_fallthru
      _
    // Predicated region
    $region10: #{aux_classifier_forward.1} parent=1 // pred_check
      _
    $region11: #{aux_classifier_forward.1} parent=1 // pred_check_branch
      %16 = sbr.rel (0) target = $region13
    $region12: #{aux_classifier_forward.1} parent=1 // pred_region
      _
    $region13: #{aux_classifier_forward.1} parent=1 // pred_fallthru
      _
    // Predicated region
    $region14: #{aux_classifier_forward.1} parent=1 // pred_check
      _
    $region15: #{aux_classifier_forward.1} parent=1 // pred_check_branch
      %18 = sbr.rel (0) target = $region17
    $region16: #{aux_classifier_forward.1} parent=1 // pred_region
      _
    $region17: #{aux_classifier_forward.1} parent=1 // pred_fallthru
      _
    // Predicated region
    $region18: #{aux_classifier_forward.1} parent=1 // pred_check
      _
    $region19: #{aux_classifier_forward.1} parent=1 // pred_check_branch
      %20 = sbr.rel (0) target = $region21
    $region20: #{aux_classifier_forward.1} parent=1 // pred_region
      _
    $region21: #{aux_classifier_forward.1} parent=1 // pred_fallthru
      _
    %v22 = vld [vmem:[%s0] sm:$0xff]
    %v23 = vld [vmem:[%s0 + $0x8] sm:$0xff]
    %v24 = vld [vmem:[%s0 + $0x10] sm:$0xff]
    %v25 = vld [vmem:[%s0 + $0x18] sm:$0xff]
    %v26 = vld [vmem:[%s0 + $0x20] sm:$0xff]
    %v27 = vld [vmem:[%s0 + $0x28] sm:$0xff]
    %v28 = vld [vmem:[%s0 + $0x30] sm:$0xff]
    %v29 = vld [vmem:[%s0 + $0x38] sm:$0xff]
    %v30 = vld [vmem:[%s1] sm:$0xff]
    %v31 = vld [vmem:[%s1 + $0x8] sm:$0xff]
    %v32 = vld [vmem:[%s1 + $0x10] sm:$0xff]
    %v33 = vld [vmem:[%s1 + $0x18] sm:$0xff]
    %v34 = vld [vmem:[%s1 + $0x20] sm:$0xff]
    %v35 = vld [vmem:[%s1 + $0x28] sm:$0xff]
    %v36 = vld [vmem:[%s1 + $0x30] sm:$0xff]
    %v37 = vld [vmem:[%s1 + $0x38] sm:$0xff]
    %v38 = vld [vmem:[%s1 + $0x40] sm:$0xff]
    %v39 = vld [vmem:[%s1 + $0x48] sm:$0xff]
    %v40 = vld [vmem:[%s1 + $0x50] sm:$0xff]
    %v41 = vld [vmem:[%s1 + $0x58] sm:$0xff]
    %v42 = vld [vmem:[%s1 + $0x60] sm:$0xff]
    %v43 = vld [vmem:[%s1 + $0x68] sm:$0xff]
    %v44 = vld [vmem:[%s1 + $0x70] sm:$0xff]
    %v45 = vld [vmem:[%s1 + $0x78] sm:$0xff]
    %v46 = vld [vmem:[%s1 + $0x80] sm:$0xff]
    %v47 = vld [vmem:[%s1 + $0x88] sm:$0xff]
    %v48 = vld [vmem:[%s1 + $0x90] sm:$0xff]
    %v49 = vld [vmem:[%s1 + $0x98] sm:$0xff]
    %v50 = vld [vmem:[%s1 + $0xa0] sm:$0xff]
    %v51 = vld [vmem:[%s1 + $0xa8] sm:$0xff]
    %v52 = vld [vmem:[%s1 + $0xb0] sm:$0xff]
    %v53 = vld [vmem:[%s1 + $0xb8] sm:$0xff]
    %v54 = vld [vmem:[%s1 + $0xc0] sm:$0xf]
    %vm55 = vcmask 556032
    %v57 = vsel %vm55, %v23, 0
    %v60 = vsel %vm55, %v25, 0
    %v63 = vsel %vm55, %v27, 0
    %v66 = vsel %vm55, %v29, 0
    %vm68 = vcmask 1043456
    %v70 = vsel %vm68, %v54, 0
    %72 = vmatprep.subr.mxu0 0.0
    %73 = vmatpush1.msra.mxu0 %v30
    %74 = vmatprep.subr.mxu0 0.0
    %75 = vmatpush1.msra.mxu0 %v31
    %76 = vmatprep.subr.mxu0 0.0
    %77 = vmatpush1.msra.mxu0 %v32
    %78 = vmatprep.subr.mxu0 0.0
    %79 = vmatpush1.msra.mxu0 %v33
    %80 = vmatprep.subr.mxu0 0.0
    %81 = vmatpush1.msra.mxu0 %v34
    %82 = vmatprep.subr.mxu0 0.0
    %83 = vmatpush1.msra.mxu0 %v35
    %84 = vmatprep.subr.mxu0 0.0
    %85 = vmatpush1.msra.mxu0 %v36
    %86 = vmatprep.subr.mxu0 0.0
    %87 = vmatpush1.msra.mxu0 %v37
    %88 = vmatprep.subr.mxu0 0.0
    %89 = vmatpush1.msra.mxu0 %v38
    %90 = vmatprep.subr.mxu0 0.0
    %91 = vmatpush1.msra.mxu0 %v39
    %92 = vmatprep.subr.mxu0 0.0
    %93 = vmatpush1.msra.mxu0 %v40
    %94 = vmatprep.subr.mxu0 0.0
    %95 = vmatpush1.msra.mxu0 %v41
    %96 = vmatprep.subr.mxu0 0.0
    %97 = vmatpush1.msra.mxu0 %v42
    %98 = vmatprep.subr.mxu0 0.0
    %99 = vmatpush1.msra.mxu0 %v43
    %100 = vmatprep.subr.mxu0 0.0
    %101 = vmatpush1.msra.mxu0 %v44
    %102 = vmatprep.subr.mxu0 0.0
    %103 = vmatpush1.msra.mxu0 %v45
    %104 = vmatprep.subr.mxu0 0.0
    %105 = vmatpush1.msra.mxu0 %v46
    %106 = vmatprep.subr.mxu0 0.0
    %107 = vmatpush1.msra.mxu0 %v47
    %108 = vmatprep.subr.mxu0 0.0
    %109 = vmatpush1.msra.mxu0 %v48
    %110 = vmatprep.subr.mxu0 0.0
    %111 = vmatpush1.msra.mxu0 %v49
    %112 = vmatprep.subr.mxu0 0.0
    %113 = vmatpush1.msra.mxu0 %v50
    %114 = vmatprep.subr.mxu0 0.0
    %115 = vmatpush1.msra.mxu0 %v51
    %116 = vmatprep.subr.mxu0 0.0
    %117 = vmatpush1.msra.mxu0 %v52
    %118 = vmatprep.subr.mxu0 0.0
    %119 = vmatpush1.msra.mxu0 %v53
    %120 = vmatprep.subr.mxu0 0.0
    %121 = vmatpush1.msra.mxu0 %v70
    %122 = vmatprep.subr.mxu0 0.0
    %123 = vmatpush1.msra.mxu0 0.0
    %124 = vmatprep.subr.mxu0 0.0
    %125 = vmatpush1.msra.mxu0 0.0
    %126 = vmatprep.subr.mxu0 0.0
    %127 = vmatpush1.msra.mxu0 0.0
    %128 = vmatprep.subr.mxu0 0.0
    %129 = vmatpush1.msra.mxu0 0.0
    %130 = vmatprep.subr.mxu0 0.0
    %131 = vmatpush1.msra.mxu0 0.0
    %132 = vmatprep.subr.mxu0 0.0
    %133 = vmatpush1.msra.mxu0 0.0
    %134 = vmatprep.subr.mxu0 0.0
    %135 = vmatpush1.msra.mxu0 0.0
    %136 = vmatprep.mubr.f32.mxu0 %v57
    %137 = vmatmul.mubr.f32.gmra.mrb[0].mxu0 %v22
    %v138 = vpop.f32.mrb[0].mxu0
    %v139 = vadd.f32 0.0, %v138
    %v140 = vpop.f32.mrb[0].mxu0
    %141 = vmatprep.mubr.f32.mxu0 %v60
    %142 = vmatmul.mubr.f32.gmra.mrb[0].mxu0 %v24
    %v143 = vpop.f32.mrb[0].mxu0
    %v144 = vadd.f32 0.0, %v143
    %v145 = vpop.f32.mrb[0].mxu0
    %146 = vmatprep.mubr.f32.mxu0 %v63
    %147 = vmatmul.mubr.f32.gmra.mrb[0].mxu0 %v26
    %v148 = vpop.f32.mrb[0].mxu0
    %v149 = vadd.f32 0.0, %v148
    %v150 = vpop.f32.mrb[0].mxu0
    %151 = vmatprep.mubr.f32.mxu0 %v66
    %152 = vmatmul.mubr.f32.gmra.mrb[0].mxu0 %v28
    %v153 = vpop.f32.mrb[0].mxu0
    %v154 = vadd.f32 0.0, %v153
    %v155 = vpop.f32.mrb[0].mxu0
    %156 = vdwg.mxu0
    %157 = vxpose.xlu0.b32.start [1/16] %v139, 128
    %158 = vxpose.xlu0.b32.cont [2/16] %v144, 128
    %159 = vxpose.xlu0.b32.cont [3/16] %v149, 128
    %160 = vxpose.xlu0.b32.cont [4/16] %v154, 128
    %161 = vxpose.xlu0.b32.cont [5/16] 0.0, 128
    %162 = vxpose.xlu0.b32.cont [6/16] 0.0, 128
    %163 = vxpose.xlu0.b32.cont [7/16] 0.0, 128
    %164 = vxpose.xlu0.b32.cont [8/16] 0.0, 128
    %165 = vxpose.xlu0.b32.cont [9/16] 0.0, 128
    %166 = vxpose.xlu0.b32.cont [10/16] 0.0, 128
    %167 = vxpose.xlu0.b32.cont [11/16] 0.0, 128
    %168 = vxpose.xlu0.b32.cont [12/16] 0.0, 128
    %169 = vxpose.xlu0.b32.cont [13/16] 0.0, 128
    %170 = vxpose.xlu0.b32.cont [14/16] 0.0, 128
    %171 = vxpose.xlu0.b32.cont [15/16] 0.0, 128
    %172 = vxpose.xlu0.b32.end [16/16] 0.0, 128
    %v173 = vpop.trf.xlu0
    %v174 = vpop.trf.xlu0
    %v175 = vpop.trf.xlu0
    %v176 = vpop.trf.xlu0
    %v177 = vpop.trf.xlu0
    %v178 = vpop.trf.xlu0
    %v179 = vpop.trf.xlu0
    %v180 = vpop.trf.xlu0
    %v181 = vpop.trf.xlu0
    %v182 = vpop.trf.xlu0
    %v183 = vpop.trf.xlu0
    %v184 = vpop.trf.xlu0
    %v185 = vpop.trf.xlu0
    %v186 = vpop.trf.xlu0
    %v187 = vpop.trf.xlu0
    %v188 = vpop.trf.xlu0
    %191 = vrot.lane.b32.xlu0 %v173, 112
    %v192 = vpop.permute.xlu0 %191
    %193 = vrot.lane.b32.xlu0 %v174, 112
    %v194 = vpop.permute.xlu0 %193
    %v195 = vld [vmem:[%s2] sm:$0xff]
    %v196 = vld [vmem:[%s2 + $0x8] sm:$0xff]
    %v197 = vld [vmem:[%s2 + $0x10] sm:$0x1]
    %v198 = vlaneseq
    %v199 = vshrl.u32 %v198, 7
    %v200 = vsub.s32 0, %v199
    %v201 = vrot.slane %v197, %v200
    %vm202 = vcmask 130048
    %v203 = vsel %vm202, %v173, 0
    %v205 = vsel %vm202, %v174, 0
    %v207 = vsel %vm202, %v192, 0
    %v209 = vsel %vm202, %v194, 0
    %211 = vmatprep.subr.mxu0 0.0
    %212 = vmatpush1.msra.mxu0 %v195
    %213 = vmatprep.subr.mxu0 0.0
    %214 = vmatpush1.msra.mxu0 %v196
    %215 = vmatprep.subr.mxu0 0.0
    %216 = vmatpush1.msra.mxu0 0.0
    %217 = vmatprep.subr.mxu0 0.0
    %218 = vmatpush1.msra.mxu0 0.0
    %219 = vmatprep.subr.mxu0 0.0
    %220 = vmatpush1.msra.mxu0 0.0
    %221 = vmatprep.subr.mxu0 0.0
    %222 = vmatpush1.msra.mxu0 0.0
    %223 = vmatprep.subr.mxu0 0.0
    %224 = vmatpush1.msra.mxu0 0.0
    %225 = vmatprep.subr.mxu0 0.0
    %226 = vmatpush1.msra.mxu0 0.0
    %227 = vmatprep.subr.mxu0 0.0
    %228 = vmatpush1.msra.mxu0 0.0
    %229 = vmatprep.subr.mxu0 0.0
    %230 = vmatpush1.msra.mxu0 0.0
    %231 = vmatprep.subr.mxu0 0.0
    %232 = vmatpush1.msra.mxu0 0.0
    %233 = vmatprep.subr.mxu0 0.0
    %234 = vmatpush1.msra.mxu0 0.0
    %235 = vmatprep.subr.mxu0 0.0
    %236 = vmatpush1.msra.mxu0 0.0
    %237 = vmatprep.subr.mxu0 0.0
    %238 = vmatpush1.msra.mxu0 0.0
    %239 = vmatprep.subr.mxu0 0.0
    %240 = vmatpush1.msra.mxu0 0.0
    %241 = vmatprep.subr.mxu0 0.0
    %242 = vmatpush1.msra.mxu0 0.0
    %243 = vmatprep.subr.mxu0 0.0
    %244 = vmatpush1.msra.mxu0 0.0
    %245 = vmatprep.subr.mxu0 0.0
    %246 = vmatpush1.msra.mxu0 0.0
    %247 = vmatprep.subr.mxu0 0.0
    %248 = vmatpush1.msra.mxu0 0.0
    %249 = vmatprep.subr.mxu0 0.0
    %250 = vmatpush1.msra.mxu0 0.0
    %251 = vmatprep.subr.mxu0 0.0
    %252 = vmatpush1.msra.mxu0 0.0
    %253 = vmatprep.subr.mxu0 0.0
    %254 = vmatpush1.msra.mxu0 0.0
    %255 = vmatprep.subr.mxu0 0.0
    %256 = vmatpush1.msra.mxu0 0.0
    %257 = vmatprep.subr.mxu0 0.0
    %258 = vmatpush1.msra.mxu0 0.0
    %259 = vmatprep.subr.mxu0 0.0
    %260 = vmatpush1.msra.mxu0 0.0
    %261 = vmatprep.subr.mxu0 0.0
    %262 = vmatpush1.msra.mxu0 0.0
    %263 = vmatprep.subr.mxu0 0.0
    %264 = vmatpush1.msra.mxu0 0.0
    %265 = vmatprep.subr.mxu0 0.0
    %266 = vmatpush1.msra.mxu0 0.0
    %267 = vmatprep.subr.mxu0 0.0
    %268 = vmatpush1.msra.mxu0 0.0
    %269 = vmatprep.subr.mxu0 0.0
    %270 = vmatpush1.msra.mxu0 0.0
    %271 = vmatprep.subr.mxu0 0.0
    %272 = vmatpush1.msra.mxu0 0.0
    %273 = vmatprep.subr.mxu0 0.0
    %274 = vmatpush1.msra.mxu0 0.0
    %275 = vmatprep.mubr.f32.mxu0 0.0
    %276 = vmatmul.mubr.f32.gmra.mrb[0].mxu0 %v203
    %v277 = vpop.f32.mrb[0].mxu0
    %v278 = vadd.f32 %v201, %v277
    %v279 = vpop.f32.mrb[0].mxu0
    %280 = vmatprep.mubr.f32.mxu0 0.0
    %281 = vmatmul.mubr.f32.gmra.mrb[0].mxu0 %v205
    %v282 = vpop.f32.mrb[0].mxu0
    %v283 = vadd.f32 %v201, %v282
    %v284 = vpop.f32.mrb[0].mxu0
    %285 = vmatprep.mubr.f32.mxu0 0.0
    %286 = vmatmul.mubr.f32.gmra.mrb[0].mxu0 %v207
    %v287 = vpop.f32.mrb[0].mxu0
    %v288 = vadd.f32 %v201, %v287
    %v289 = vpop.f32.mrb[0].mxu0
    %290 = vmatprep.mubr.f32.mxu0 0.0
    %291 = vmatmul.mubr.f32.gmra.mrb[0].mxu0 %v209
    %v292 = vpop.f32.mrb[0].mxu0
    %v293 = vadd.f32 %v201, %v292
    %v294 = vpop.f32.mrb[0].mxu0
    %295 = vdwg.mxu0
    %v296 = vmax.f32 %v278, 0.0
    %v297 = vmax.f32 %v283, 0.0
    %v298 = vmax.f32 %v288, 0.0
    %v299 = vmax.f32 %v293, 0.0
    %v300 = vpack.c.bf16 %v296, %v296
    %v301 = vpack.c.bf16 %v298, %v298
    %v302 = vld [vmem:[%s3] sm:$0xf]
    %v303 = vld [vmem:[%s3 + $0x10] sm:$0xf]
    %v304 = vld [vmem:[%s3 + $0x20] sm:$0xf]
    %v305 = vld [vmem:[%s3 + $0x30] sm:$0xf]
    %v306 = vld [vmem:[%s3 + $0x40] sm:$0xf]
    %v307 = vld [vmem:[%s3 + $0x50] sm:$0xf]
    %v308 = vld [vmem:[%s3 + $0x60] sm:$0xf]
    %v309 = vld [vmem:[%s3 + $0x70] sm:$0xf]
    %v310 = vld [vmem:[%s3 + $0x80] sm:$0xf]
    %v311 = vld [vmem:[%s3 + $0x90] sm:$0xf]
    %v312 = vld [vmem:[%s3 + $0xa0] sm:$0xf]
    %v313 = vld [vmem:[%s3 + $0xb0] sm:$0xf]
    %v314 = vld [vmem:[%s3 + $0xc0] sm:$0xf]
    %v315 = vld [vmem:[%s3 + $0xd0] sm:$0xf]
    %v316 = vld [vmem:[%s3 + $0xe0] sm:$0xf]
    %v317 = vld [vmem:[%s3 + $0xf0] sm:$0xf]
    %v320 = vunpack.c.l.b16 %v300
    %v321 = vunpack.c.l.b16 %v301
    %v322 = vrot.slane %v320, 1
    %vm323 = vcmask 1041409
    %v324 = vsel %vm323, %v321, %v322
    %v325 = vpack.c.b16 %v324, %v324
    %v343 = vunpack.c.l.b16 %v302
    %v344 = vunpack.c.l.b16 %v303
    %v345 = vunpack.c.l.b16 %v304
    %v346 = vunpack.c.l.b16 %v305
    %v347 = vunpack.c.l.b16 %v306
    %v348 = vunpack.c.l.b16 %v307
    %v349 = vunpack.c.l.b16 %v308
    %v350 = vunpack.c.l.b16 %v309
    %v351 = vunpack.c.l.b16 %v310
    %v352 = vunpack.c.l.b16 %v311
    %v353 = vunpack.c.l.b16 %v312
    %v354 = vunpack.c.l.b16 %v313
    %v355 = vunpack.c.l.b16 %v314
    %v356 = vunpack.c.l.b16 %v315
    %v357 = vunpack.c.l.b16 %v316
    %v358 = vunpack.c.l.b16 %v317
    %v359 = vpack.c.b16 %v344, %v343
    %v360 = vpack.c.b16 %v346, %v345
    %v361 = vpack.c.b16 %v348, %v347
    %v362 = vpack.c.b16 %v350, %v349
    %v363 = vpack.c.b16 %v352, %v351
    %v364 = vpack.c.b16 %v354, %v353
    %v365 = vpack.c.b16 %v356, %v355
    %v366 = vpack.c.b16 %v358, %v357
    %367 = vrot.lane.b32.xlu0 %v359, 96
    %v368 = vpop.permute.xlu0 %367
    %369 = vrot.lane.b32.xlu0 %v360, 96
    %v370 = vpop.permute.xlu0 %369
    %371 = vrot.lane.b32.xlu0 %v361, 96
    %v372 = vpop.permute.xlu0 %371
    %373 = vrot.lane.b32.xlu0 %v362, 96
    %v374 = vpop.permute.xlu0 %373
    %375 = vrot.lane.b32.xlu0 %v363, 96
    %v376 = vpop.permute.xlu0 %375
    %377 = vrot.lane.b32.xlu0 %v364, 96
    %v378 = vpop.permute.xlu0 %377
    %379 = vrot.lane.b32.xlu0 %v365, 96
    %v380 = vpop.permute.xlu0 %379
    %381 = vrot.lane.b32.xlu0 %v366, 96
    %v382 = vpop.permute.xlu0 %381
    %391 = vmatprep.subr.bf16.mxu0 0
    %392 = vmatpush1.bf16.msra.mxu0 %v368
    %393 = vmatprep.subr.bf16.mxu0 0
    %394 = vmatpush1.bf16.msra.mxu0 %v370
    %395 = vmatprep.subr.bf16.mxu0 0
    %396 = vmatpush1.bf16.msra.mxu0 %v372
    %397 = vmatprep.subr.bf16.mxu0 0
    %398 = vmatpush1.bf16.msra.mxu0 %v374
    %399 = vmatprep.subr.bf16.mxu0 0
    %400 = vmatpush1.bf16.msra.mxu0 %v376
    %401 = vmatprep.subr.bf16.mxu0 0
    %402 = vmatpush1.bf16.msra.mxu0 %v378
    %403 = vmatprep.subr.bf16.mxu0 0
    %404 = vmatpush1.bf16.msra.mxu0 %v380
    %405 = vmatprep.subr.bf16.mxu0 0
    %406 = vmatpush1.bf16.msra.mxu0 %v382
    %407 = vmatprep.subr.bf16.mxu0 0
    %408 = vmatpush1.bf16.msra.mxu0 0
    %409 = vmatprep.subr.bf16.mxu0 0
    %410 = vmatpush1.bf16.msra.mxu0 0
    %411 = vmatprep.subr.bf16.mxu0 0
    %412 = vmatpush1.bf16.msra.mxu0 0
    %413 = vmatprep.subr.bf16.mxu0 0
    %414 = vmatpush1.bf16.msra.mxu0 0
    %415 = vmatprep.subr.bf16.mxu0 0
    %416 = vmatpush1.bf16.msra.mxu0 0
    %417 = vmatprep.subr.bf16.mxu0 0
    %418 = vmatpush1.bf16.msra.mxu0 0
    %419 = vmatprep.subr.bf16.mxu0 0
    %420 = vmatpush1.bf16.msra.mxu0 0
    %421 = vmatprep.subr.bf16.mxu0 0
    %422 = vmatpush1.bf16.msra.mxu0 0
    %423 = vmatprep.mubr.bf16.mxu0 0
    %424 = vmatmul.mubr.bf16.gmra.mrb[0].mxu0 %v325
    %v425 = vpop.f32.mrb[0].mxu0
    %v426 = vadd.f32 0.0, %v425
    %v427 = vpop.f32.mrb[0].mxu0
    %v428 = vpop.f32.mrb[0].mxu0
    %v429 = vpop.f32.mrb[0].mxu0
    %430 = vdwg.mxu0
    %v431 = vrot.slane %v321, 7
    %v432 = vsel %vm323, %v431, %v320
    %v433 = vpack.c.b16 %v432, %v432
    %443 = vmatprep.subr.bf16.mxu0 0
    %444 = vmatpush1.bf16.msra.mxu0 %v359
    %445 = vmatprep.subr.bf16.mxu0 0
    %446 = vmatpush1.bf16.msra.mxu0 %v360
    %447 = vmatprep.subr.bf16.mxu0 0
    %448 = vmatpush1.bf16.msra.mxu0 %v361
    %449 = vmatprep.subr.bf16.mxu0 0
    %450 = vmatpush1.bf16.msra.mxu0 %v362
    %451 = vmatprep.subr.bf16.mxu0 0
    %452 = vmatpush1.bf16.msra.mxu0 %v363
    %453 = vmatprep.subr.bf16.mxu0 0
    %454 = vmatpush1.bf16.msra.mxu0 %v364
    %455 = vmatprep.subr.bf16.mxu0 0
    %456 = vmatpush1.bf16.msra.mxu0 %v365
    %457 = vmatprep.subr.bf16.mxu0 0
    %458 = vmatpush1.bf16.msra.mxu0 %v366
    %459 = vmatprep.subr.bf16.mxu0 0
    %460 = vmatpush1.bf16.msra.mxu0 0
    %461 = vmatprep.subr.bf16.mxu0 0
    %462 = vmatpush1.bf16.msra.mxu0 0
    %463 = vmatprep.subr.bf16.mxu0 0
    %464 = vmatpush1.bf16.msra.mxu0 0
    %465 = vmatprep.subr.bf16.mxu0 0
    %466 = vmatpush1.bf16.msra.mxu0 0
    %467 = vmatprep.subr.bf16.mxu0 0
    %468 = vmatpush1.bf16.msra.mxu0 0
    %469 = vmatprep.subr.bf16.mxu0 0
    %470 = vmatpush1.bf16.msra.mxu0 0
    %471 = vmatprep.subr.bf16.mxu0 0
    %472 = vmatpush1.bf16.msra.mxu0 0
    %473 = vmatprep.subr.bf16.mxu0 0
    %474 = vmatpush1.bf16.msra.mxu0 0
    %475 = vmatprep.mubr.bf16.mxu0 0
    %476 = vmatmul.mubr.bf16.gmra.mrb[0].mxu0 %v433
    %v477 = vpop.f32.mrb[0].mxu0
    %v478 = vadd.f32 %v426, %v477
    %v479 = vpop.f32.mrb[0].mxu0
    %v480 = vpop.f32.mrb[0].mxu0
    %v481 = vpop.f32.mrb[0].mxu0
    %482 = vdwg.mxu0
    %v483 = vrot.slane %v320, 2
    %v484 = vrot.slane %v321, 1
    %v485 = vsel %vm323, %v484, %v483
    %v486 = vpack.c.b16 %v485, %v485
    %488 = vrot.lane.b32.xlu0 %v359, 64
    %v489 = vpop.permute.xlu0 %488
    %490 = vrot.lane.b32.xlu0 %v360, 64
    %v491 = vpop.permute.xlu0 %490
    %492 = vrot.lane.b32.xlu0 %v361, 64
    %v493 = vpop.permute.xlu0 %492
    %494 = vrot.lane.b32.xlu0 %v362, 64
    %v495 = vpop.permute.xlu0 %494
    %496 = vrot.lane.b32.xlu0 %v363, 64
    %v497 = vpop.permute.xlu0 %496
    %498 = vrot.lane.b32.xlu0 %v364, 64
    %v499 = vpop.permute.xlu0 %498
    %500 = vrot.lane.b32.xlu0 %v365, 64
    %v501 = vpop.permute.xlu0 %500
    %502 = vrot.lane.b32.xlu0 %v366, 64
    %v503 = vpop.permute.xlu0 %502
    %512 = vmatprep.subr.bf16.mxu0 0
    %513 = vmatpush1.bf16.msra.mxu0 %v489
    %514 = vmatprep.subr.bf16.mxu0 0
    %515 = vmatpush1.bf16.msra.mxu0 %v491
    %516 = vmatprep.subr.bf16.mxu0 0
    %517 = vmatpush1.bf16.msra.mxu0 %v493
    %518 = vmatprep.subr.bf16.mxu0 0
    %519 = vmatpush1.bf16.msra.mxu0 %v495
    %520 = vmatprep.subr.bf16.mxu0 0
    %521 = vmatpush1.bf16.msra.mxu0 %v497
    %522 = vmatprep.subr.bf16.mxu0 0
    %523 = vmatpush1.bf16.msra.mxu0 %v499
    %524 = vmatprep.subr.bf16.mxu0 0
    %525 = vmatpush1.bf16.msra.mxu0 %v501
    %526 = vmatprep.subr.bf16.mxu0 0
    %527 = vmatpush1.bf16.msra.mxu0 %v503
    %528 = vmatprep.subr.bf16.mxu0 0
    %529 = vmatpush1.bf16.msra.mxu0 0
    %530 = vmatprep.subr.bf16.mxu0 0
    %531 = vmatpush1.bf16.msra.mxu0 0
    %532 = vmatprep.subr.bf16.mxu0 0
    %533 = vmatpush1.bf16.msra.mxu0 0
    %534 = vmatprep.subr.bf16.mxu0 0
    %535 = vmatpush1.bf16.msra.mxu0 0
    %536 = vmatprep.subr.bf16.mxu0 0
    %537 = vmatpush1.bf16.msra.mxu0 0
    %538 = vmatprep.subr.bf16.mxu0 0
    %539 = vmatpush1.bf16.msra.mxu0 0
    %540 = vmatprep.subr.bf16.mxu0 0
    %541 = vmatpush1.bf16.msra.mxu0 0
    %542 = vmatprep.subr.bf16.mxu0 0
    %543 = vmatpush1.bf16.msra.mxu0 0
    %544 = vmatprep.mubr.bf16.mxu0 0
    %545 = vmatmul.mubr.bf16.gmra.mrb[0].mxu0 %v486
    %v546 = vpop.f32.mrb[0].mxu0
    %v547 = vadd.f32 0.0, %v546
    %v548 = vpop.f32.mrb[0].mxu0
    %v549 = vpop.f32.mrb[0].mxu0
    %v550 = vpop.f32.mrb[0].mxu0
    %551 = vdwg.mxu0
    %v552 = vadd.f32 %v478, %v547
    %v553 = vrot.slane %v320, 3
    %v554 = vrot.slane %v321, 2
    %v555 = vsel %vm323, %v554, %v553
    %v556 = vpack.c.b16 %v555, %v555
    %558 = vrot.lane.b32.xlu0 %v359, 32
    %v559 = vpop.permute.xlu0 %558
    %560 = vrot.lane.b32.xlu0 %v360, 32
    %v561 = vpop.permute.xlu0 %560
    %562 = vrot.lane.b32.xlu0 %v361, 32
    %v563 = vpop.permute.xlu0 %562
    %564 = vrot.lane.b32.xlu0 %v362, 32
    %v565 = vpop.permute.xlu0 %564
    %566 = vrot.lane.b32.xlu0 %v363, 32
    %v567 = vpop.permute.xlu0 %566
    %568 = vrot.lane.b32.xlu0 %v364, 32
    %v569 = vpop.permute.xlu0 %568
    %570 = vrot.lane.b32.xlu0 %v365, 32
    %v571 = vpop.permute.xlu0 %570
    %572 = vrot.lane.b32.xlu0 %v366, 32
    %v573 = vpop.permute.xlu0 %572
    %582 = vmatprep.subr.bf16.mxu0 0
    %583 = vmatpush1.bf16.msra.mxu0 %v559
    %584 = vmatprep.subr.bf16.mxu0 0
    %585 = vmatpush1.bf16.msra.mxu0 %v561
    %586 = vmatprep.subr.bf16.mxu0 0
    %587 = vmatpush1.bf16.msra.mxu0 %v563
    %588 = vmatprep.subr.bf16.mxu0 0
    %589 = vmatpush1.bf16.msra.mxu0 %v565
    %590 = vmatprep.subr.bf16.mxu0 0
    %591 = vmatpush1.bf16.msra.mxu0 %v567
    %592 = vmatprep.subr.bf16.mxu0 0
    %593 = vmatpush1.bf16.msra.mxu0 %v569
    %594 = vmatprep.subr.bf16.mxu0 0
    %595 = vmatpush1.bf16.msra.mxu0 %v571
    %596 = vmatprep.subr.bf16.mxu0 0
    %597 = vmatpush1.bf16.msra.mxu0 %v573
    %598 = vmatprep.subr.bf16.mxu0 0
    %599 = vmatpush1.bf16.msra.mxu0 0
    %600 = vmatprep.subr.bf16.mxu0 0
    %601 = vmatpush1.bf16.msra.mxu0 0
    %602 = vmatprep.subr.bf16.mxu0 0
    %603 = vmatpush1.bf16.msra.mxu0 0
    %604 = vmatprep.subr.bf16.mxu0 0
    %605 = vmatpush1.bf16.msra.mxu0 0
    %606 = vmatprep.subr.bf16.mxu0 0
    %607 = vmatpush1.bf16.msra.mxu0 0
    %608 = vmatprep.subr.bf16.mxu0 0
    %609 = vmatpush1.bf16.msra.mxu0 0
    %610 = vmatprep.subr.bf16.mxu0 0
    %611 = vmatpush1.bf16.msra.mxu0 0
    %612 = vmatprep.subr.bf16.mxu0 0
    %613 = vmatpush1.bf16.msra.mxu0 0
    %614 = vmatprep.mubr.bf16.mxu0 0
    %615 = vmatmul.mubr.bf16.gmra.mrb[0].mxu0 %v556
    %v616 = vpop.f32.mrb[0].mxu0
    %v617 = vadd.f32 0.0, %v616
    %v618 = vpop.f32.mrb[0].mxu0
    %v619 = vpop.f32.mrb[0].mxu0
    %v620 = vpop.f32.mrb[0].mxu0
    %621 = vdwg.mxu0
    %v622 = vadd.f32 %v552, %v617
    %v623 = vld [vmem:[%s3 + $0x4] sm:$0xf]
    %v624 = vld [vmem:[%s3 + $0x14] sm:$0xf]
    %v625 = vld [vmem:[%s3 + $0x24] sm:$0xf]
    %v626 = vld [vmem:[%s3 + $0x34] sm:$0xf]
    %v627 = vld [vmem:[%s3 + $0x44] sm:$0xf]
    %v628 = vld [vmem:[%s3 + $0x54] sm:$0xf]
    %v629 = vld [vmem:[%s3 + $0x64] sm:$0xf]
    %v630 = vld [vmem:[%s3 + $0x74] sm:$0xf]
    %v631 = vld [vmem:[%s3 + $0x84] sm:$0xf]
    %v632 = vld [vmem:[%s3 + $0x94] sm:$0xf]
    %v633 = vld [vmem:[%s3 + $0xa4] sm:$0xf]
    %v634 = vld [vmem:[%s3 + $0xb4] sm:$0xf]
    %v635 = vld [vmem:[%s3 + $0xc4] sm:$0xf]
    %v636 = vld [vmem:[%s3 + $0xd4] sm:$0xf]
    %v637 = vld [vmem:[%s3 + $0xe4] sm:$0xf]
    %v638 = vld [vmem:[%s3 + $0xf4] sm:$0xf]
    %v639 = vrot.slane %v320, 4
    %v640 = vrot.slane %v321, 3
    %v641 = vsel %vm323, %v640, %v639
    %v642 = vpack.c.b16 %v641, %v641
    %v660 = vunpack.c.l.b16 %v623
    %v661 = vunpack.c.l.b16 %v624
    %v662 = vunpack.c.l.b16 %v625
    %v663 = vunpack.c.l.b16 %v626
    %v664 = vunpack.c.l.b16 %v627
    %v665 = vunpack.c.l.b16 %v628
    %v666 = vunpack.c.l.b16 %v629
    %v667 = vunpack.c.l.b16 %v630
    %v668 = vunpack.c.l.b16 %v631
    %v669 = vunpack.c.l.b16 %v632
    %v670 = vunpack.c.l.b16 %v633
    %v671 = vunpack.c.l.b16 %v634
    %v672 = vunpack.c.l.b16 %v635
    %v673 = vunpack.c.l.b16 %v636
    %v674 = vunpack.c.l.b16 %v637
    %v675 = vunpack.c.l.b16 %v638
    %v676 = vpack.c.b16 %v661, %v660
    %v677 = vpack.c.b16 %v663, %v662
    %v678 = vpack.c.b16 %v665, %v664
    %v679 = vpack.c.b16 %v667, %v666
    %v680 = vpack.c.b16 %v669, %v668
    %v681 = vpack.c.b16 %v671, %v670
    %v682 = vpack.c.b16 %v673, %v672
    %v683 = vpack.c.b16 %v675, %v674
    %692 = vmatprep.subr.bf16.mxu0 0
    %693 = vmatpush1.bf16.msra.mxu0 %v676
    %694 = vmatprep.subr.bf16.mxu0 0
    %695 = vmatpush1.bf16.msra.mxu0 %v677
    %696 = vmatprep.subr.bf16.mxu0 0
    %697 = vmatpush1.bf16.msra.mxu0 %v678
    %698 = vmatprep.subr.bf16.mxu0 0
    %699 = vmatpush1.bf16.msra.mxu0 %v679
    %700 = vmatprep.subr.bf16.mxu0 0
    %701 = vmatpush1.bf16.msra.mxu0 %v680
    %702 = vmatprep.subr.bf16.mxu0 0
    %703 = vmatpush1.bf16.msra.mxu0 %v681
    %704 = vmatprep.subr.bf16.mxu0 0
    %705 = vmatpush1.bf16.msra.mxu0 %v682
    %706 = vmatprep.subr.bf16.mxu0 0
    %707 = vmatpush1.bf16.msra.mxu0 %v683
    %708 = vmatprep.subr.bf16.mxu0 0
    %709 = vmatpush1.bf16.msra.mxu0 0
    %710 = vmatprep.subr.bf16.mxu0 0
    %711 = vmatpush1.bf16.msra.mxu0 0
    %712 = vmatprep.subr.bf16.mxu0 0
    %713 = vmatpush1.bf16.msra.mxu0 0
    %714 = vmatprep.subr.bf16.mxu0 0
    %715 = vmatpush1.bf16.msra.mxu0 0
    %716 = vmatprep.subr.bf16.mxu0 0
    %717 = vmatpush1.bf16.msra.mxu0 0
    %718 = vmatprep.subr.bf16.mxu0 0
    %719 = vmatpush1.bf16.msra.mxu0 0
    %720 = vmatprep.subr.bf16.mxu0 0
    %721 = vmatpush1.bf16.msra.mxu0 0
    %722 = vmatprep.subr.bf16.mxu0 0
    %723 = vmatpush1.bf16.msra.mxu0 0
    %724 = vmatprep.mubr.bf16.mxu0 0
    %725 = vmatmul.mubr.bf16.gmra.mrb[0].mxu0 %v642
    %v726 = vpop.f32.mrb[0].mxu0
    %v727 = vadd.f32 0.0, %v726
    %v728 = vpop.f32.mrb[0].mxu0
    %v729 = vpop.f32.mrb[0].mxu0
    %v730 = vpop.f32.mrb[0].mxu0
    %731 = vdwg.mxu0
    %v732 = vadd.f32 %v622, %v727
    %v733 = vrot.slane %v320, 5
    %v734 = vrot.slane %v321, 4
    %v735 = vsel %vm323, %v734, %v733
    %v736 = vpack.c.b16 %v735, %v735
    %738 = vrot.lane.b32.xlu0 %v676, 96
    %v739 = vpop.permute.xlu0 %738
    %740 = vrot.lane.b32.xlu0 %v677, 96
    %v741 = vpop.permute.xlu0 %740
    %742 = vrot.lane.b32.xlu0 %v678, 96
    %v743 = vpop.permute.xlu0 %742
    %744 = vrot.lane.b32.xlu0 %v679, 96
    %v745 = vpop.permute.xlu0 %744
    %746 = vrot.lane.b32.xlu0 %v680, 96
    %v747 = vpop.permute.xlu0 %746
    %748 = vrot.lane.b32.xlu0 %v681, 96
    %v749 = vpop.permute.xlu0 %748
    %750 = vrot.lane.b32.xlu0 %v682, 96
    %v751 = vpop.permute.xlu0 %750
    %752 = vrot.lane.b32.xlu0 %v683, 96
    %v753 = vpop.permute.xlu0 %752
    %762 = vmatprep.subr.bf16.mxu0 0
    %763 = vmatpush1.bf16.msra.mxu0 %v739
    %764 = vmatprep.subr.bf16.mxu0 0
    %765 = vmatpush1.bf16.msra.mxu0 %v741
    %766 = vmatprep.subr.bf16.mxu0 0
    %767 = vmatpush1.bf16.msra.mxu0 %v743
    %768 = vmatprep.subr.bf16.mxu0 0
    %769 = vmatpush1.bf16.msra.mxu0 %v745
    %770 = vmatprep.subr.bf16.mxu0 0
    %771 = vmatpush1.bf16.msra.mxu0 %v747
    %772 = vmatprep.subr.bf16.mxu0 0
    %773 = vmatpush1.bf16.msra.mxu0 %v749
    %774 = vmatprep.subr.bf16.mxu0 0
    %775 = vmatpush1.bf16.msra.mxu0 %v751
    %776 = vmatprep.subr.bf16.mxu0 0
    %777 = vmatpush1.bf16.msra.mxu0 %v753
    %778 = vmatprep.subr.bf16.mxu0 0
    %779 = vmatpush1.bf16.msra.mxu0 0
    %780 = vmatprep.subr.bf16.mxu0 0
    %781 = vmatpush1.bf16.msra.mxu0 0
    %782 = vmatprep.subr.bf16.mxu0 0
    %783 = vmatpush1.bf16.msra.mxu0 0
    %784 = vmatprep.subr.bf16.mxu0 0
    %785 = vmatpush1.bf16.msra.mxu0 0
    %786 = vmatprep.subr.bf16.mxu0 0
    %787 = vmatpush1.bf16.msra.mxu0 0
    %788 = vmatprep.subr.bf16.mxu0 0
    %789 = vmatpush1.bf16.msra.mxu0 0
    %790 = vmatprep.subr.bf16.mxu0 0
    %791 = vmatpush1.bf16.msra.mxu0 0
    %792 = vmatprep.subr.bf16.mxu0 0
    %793 = vmatpush1.bf16.msra.mxu0 0
    %794 = vmatprep.mubr.bf16.mxu0 0
    %795 = vmatmul.mubr.bf16.gmra.mrb[0].mxu0 %v736
    %v796 = vpop.f32.mrb[0].mxu0
    %v797 = vadd.f32 0.0, %v796
    %v798 = vpop.f32.mrb[0].mxu0
    %v799 = vpop.f32.mrb[0].mxu0
    %v800 = vpop.f32.mrb[0].mxu0
    %801 = vdwg.mxu0
    %v802 = vadd.f32 %v732, %v797
    %v803 = vrot.slane %v320, 6
    %v804 = vrot.slane %v321, 5
    %v805 = vsel %vm323, %v804, %v803
    %v806 = vpack.c.b16 %v805, %v805
    %808 = vrot.lane.b32.xlu0 %v676, 64
    %v809 = vpop.permute.xlu0 %808
    %810 = vrot.lane.b32.xlu0 %v677, 64
    %v811 = vpop.permute.xlu0 %810
    %812 = vrot.lane.b32.xlu0 %v678, 64
    %v813 = vpop.permute.xlu0 %812
    %814 = vrot.lane.b32.xlu0 %v679, 64
    %v815 = vpop.permute.xlu0 %814
    %816 = vrot.lane.b32.xlu0 %v680, 64
    %v817 = vpop.permute.xlu0 %816
    %818 = vrot.lane.b32.xlu0 %v681, 64
    %v819 = vpop.permute.xlu0 %818
    %820 = vrot.lane.b32.xlu0 %v682, 64
    %v821 = vpop.permute.xlu0 %820
    %822 = vrot.lane.b32.xlu0 %v683, 64
    %v823 = vpop.permute.xlu0 %822
    %832 = vmatprep.subr.bf16.mxu0 0
    %833 = vmatpush1.bf16.msra.mxu0 %v809
    %834 = vmatprep.subr.bf16.mxu0 0
    %835 = vmatpush1.bf16.msra.mxu0 %v811
    %836 = vmatprep.subr.bf16.mxu0 0
    %837 = vmatpush1.bf16.msra.mxu0 %v813
    %838 = vmatprep.subr.bf16.mxu0 0
    %839 = vmatpush1.bf16.msra.mxu0 %v815
    %840 = vmatprep.subr.bf16.mxu0 0
    %841 = vmatpush1.bf16.msra.mxu0 %v817
    %842 = vmatprep.subr.bf16.mxu0 0
    %843 = vmatpush1.bf16.msra.mxu0 %v819
    %844 = vmatprep.subr.bf16.mxu0 0
    %845 = vmatpush1.bf16.msra.mxu0 %v821
    %846 = vmatprep.subr.bf16.mxu0 0
    %847 = vmatpush1.bf16.msra.mxu0 %v823
    %848 = vmatprep.subr.bf16.mxu0 0
    %849 = vmatpush1.bf16.msra.mxu0 0
    %850 = vmatprep.subr.bf16.mxu0 0
    %851 = vmatpush1.bf16.msra.mxu0 0
    %852 = vmatprep.subr.bf16.mxu0 0
    %853 = vmatpush1.bf16.msra.mxu0 0
    %854 = vmatprep.subr.bf16.mxu0 0
    %855 = vmatpush1.bf16.msra.mxu0 0
    %856 = vmatprep.subr.bf16.mxu0 0
    %857 = vmatpush1.bf16.msra.mxu0 0
    %858 = vmatprep.subr.bf16.mxu0 0
    %859 = vmatpush1.bf16.msra.mxu0 0
    %860 = vmatprep.subr.bf16.mxu0 0
    %861 = vmatpush1.bf16.msra.mxu0 0
    %862 = vmatprep.subr.bf16.mxu0 0
    %863 = vmatpush1.bf16.msra.mxu0 0
    %864 = vmatprep.mubr.bf16.mxu0 0
    %865 = vmatmul.mubr.bf16.gmra.mrb[0].mxu0 %v806
    %v866 = vpop.f32.mrb[0].mxu0
    %v867 = vadd.f32 0.0, %v866
    %v868 = vpop.f32.mrb[0].mxu0
    %v869 = vpop.f32.mrb[0].mxu0
    %v870 = vpop.f32.mrb[0].mxu0
    %871 = vdwg.mxu0
    %v872 = vadd.f32 %v802, %v867
    %v873 = vrot.slane %v320, 7
    %v874 = vrot.slane %v321, 6
    %v875 = vsel %vm323, %v874, %v873
    %v876 = vpack.c.b16 %v875, %v875
    %878 = vrot.lane.b32.xlu0 %v676, 32
    %v879 = vpop.permute.xlu0 %878
    %880 = vrot.lane.b32.xlu0 %v677, 32
    %v881 = vpop.permute.xlu0 %880
    %882 = vrot.lane.b32.xlu0 %v678, 32
    %v883 = vpop.permute.xlu0 %882
    %884 = vrot.lane.b32.xlu0 %v679, 32
    %v885 = vpop.permute.xlu0 %884
    %886 = vrot.lane.b32.xlu0 %v680, 32
    %v887 = vpop.permute.xlu0 %886
    %888 = vrot.lane.b32.xlu0 %v681, 32
    %v889 = vpop.permute.xlu0 %888
    %890 = vrot.lane.b32.xlu0 %v682, 32
    %v891 = vpop.permute.xlu0 %890
    %892 = vrot.lane.b32.xlu0 %v683, 32
    %v893 = vpop.permute.xlu0 %892
    %902 = vmatprep.subr.bf16.mxu0 0
    %903 = vmatpush1.bf16.msra.mxu0 %v879
    %904 = vmatprep.subr.bf16.mxu0 0
    %905 = vmatpush1.bf16.msra.mxu0 %v881
    %906 = vmatprep.subr.bf16.mxu0 0
    %907 = vmatpush1.bf16.msra.mxu0 %v883
    %908 = vmatprep.subr.bf16.mxu0 0
    %909 = vmatpush1.bf16.msra.mxu0 %v885
    %910 = vmatprep.subr.bf16.mxu0 0
    %911 = vmatpush1.bf16.msra.mxu0 %v887
    %912 = vmatprep.subr.bf16.mxu0 0
    %913 = vmatpush1.bf16.msra.mxu0 %v889
    %914 = vmatprep.subr.bf16.mxu0 0
    %915 = vmatpush1.bf16.msra.mxu0 %v891
    %916 = vmatprep.subr.bf16.mxu0 0
    %917 = vmatpush1.bf16.msra.mxu0 %v893
    %918 = vmatprep.subr.bf16.mxu0 0
    %919 = vmatpush1.bf16.msra.mxu0 0
    %920 = vmatprep.subr.bf16.mxu0 0
    %921 = vmatpush1.bf16.msra.mxu0 0
    %922 = vmatprep.subr.bf16.mxu0 0
    %923 = vmatpush1.bf16.msra.mxu0 0
    %924 = vmatprep.subr.bf16.mxu0 0
    %925 = vmatpush1.bf16.msra.mxu0 0
    %926 = vmatprep.subr.bf16.mxu0 0
    %927 = vmatpush1.bf16.msra.mxu0 0
    %928 = vmatprep.subr.bf16.mxu0 0
    %929 = vmatpush1.bf16.msra.mxu0 0
    %930 = vmatprep.subr.bf16.mxu0 0
    %931 = vmatpush1.bf16.msra.mxu0 0
    %932 = vmatprep.subr.bf16.mxu0 0
    %933 = vmatpush1.bf16.msra.mxu0 0
    %934 = vmatprep.mubr.bf16.mxu0 0
    %935 = vmatmul.mubr.bf16.gmra.mrb[0].mxu0 %v876
    %v936 = vpop.f32.mrb[0].mxu0
    %v937 = vadd.f32 0.0, %v936
    %v938 = vpop.f32.mrb[0].mxu0
    %v939 = vpop.f32.mrb[0].mxu0
    %v940 = vpop.f32.mrb[0].mxu0
    %941 = vdwg.mxu0
    %v942 = vadd.f32 %v872, %v937
    %v943 = vpack.c.bf16 %v297, %v297
    %v944 = vpack.c.bf16 %v299, %v299
    %v945 = vld [vmem:[%s3 + $0x8] sm:$0xf]
    %v946 = vld [vmem:[%s3 + $0x18] sm:$0xf]
    %v947 = vld [vmem:[%s3 + $0x28] sm:$0xf]
    %v948 = vld [vmem:[%s3 + $0x38] sm:$0xf]
    %v949 = vld [vmem:[%s3 + $0x48] sm:$0xf]
    %v950 = vld [vmem:[%s3 + $0x58] sm:$0xf]
    %v951 = vld [vmem:[%s3 + $0x68] sm:$0xf]
    %v952 = vld [vmem:[%s3 + $0x78] sm:$0xf]
    %v953 = vld [vmem:[%s3 + $0x88] sm:$0xf]
    %v954 = vld [vmem:[%s3 + $0x98] sm:$0xf]
    %v955 = vld [vmem:[%s3 + $0xa8] sm:$0xf]
    %v956 = vld [vmem:[%s3 + $0xb8] sm:$0xf]
    %v957 = vld [vmem:[%s3 + $0xc8] sm:$0xf]
    %v958 = vld [vmem:[%s3 + $0xd8] sm:$0xf]
    %v959 = vld [vmem:[%s3 + $0xe8] sm:$0xf]
    %v960 = vld [vmem:[%s3 + $0xf8] sm:$0xf]
    %v963 = vunpack.c.l.b16 %v943
    %v964 = vunpack.c.l.b16 %v944
    %v965 = vrot.slane %v964, 7
    %v966 = vsel %vm323, %v965, %v963
    %v967 = vpack.c.b16 %v966, %v966
    %v985 = vunpack.c.l.b16 %v945
    %v986 = vunpack.c.l.b16 %v946
    %v987 = vunpack.c.l.b16 %v947
    %v988 = vunpack.c.l.b16 %v948
    %v989 = vunpack.c.l.b16 %v949
    %v990 = vunpack.c.l.b16 %v950
    %v991 = vunpack.c.l.b16 %v951
    %v992 = vunpack.c.l.b16 %v952
    %v993 = vunpack.c.l.b16 %v953
    %v994 = vunpack.c.l.b16 %v954
    %v995 = vunpack.c.l.b16 %v955
    %v996 = vunpack.c.l.b16 %v956
    %v997 = vunpack.c.l.b16 %v957
    %v998 = vunpack.c.l.b16 %v958
    %v999 = vunpack.c.l.b16 %v959
    %v1000 = vunpack.c.l.b16 %v960
    %v1001 = vpack.c.b16 %v986, %v985
    %v1002 = vpack.c.b16 %v988, %v987
    %v1003 = vpack.c.b16 %v990, %v989
    %v1004 = vpack.c.b16 %v992, %v991
    %v1005 = vpack.c.b16 %v994, %v993
    %v1006 = vpack.c.b16 %v996, %v995
    %v1007 = vpack.c.b16 %v998, %v997
    %v1008 = vpack.c.b16 %v1000, %v999
    %1017 = vmatprep.subr.bf16.mxu0 0
    %1018 = vmatpush1.bf16.msra.mxu0 %v1001
    %1019 = vmatprep.subr.bf16.mxu0 0
    %1020 = vmatpush1.bf16.msra.mxu0 %v1002
    %1021 = vmatprep.subr.bf16.mxu0 0
    %1022 = vmatpush1.bf16.msra.mxu0 %v1003
    %1023 = vmatprep.subr.bf16.mxu0 0
    %1024 = vmatpush1.bf16.msra.mxu0 %v1004
    %1025 = vmatprep.subr.bf16.mxu0 0
    %1026 = vmatpush1.bf16.msra.mxu0 %v1005
    %1027 = vmatprep.subr.bf16.mxu0 0
    %1028 = vmatpush1.bf16.msra.mxu0 %v1006
    %1029 = vmatprep.subr.bf16.mxu0 0
    %1030 = vmatpush1.bf16.msra.mxu0 %v1007
    %1031 = vmatprep.subr.bf16.mxu0 0
    %1032 = vmatpush1.bf16.msra.mxu0 %v1008
    %1033 = vmatprep.subr.bf16.mxu0 0
    %1034 = vmatpush1.bf16.msra.mxu0 0
    %1035 = vmatprep.subr.bf16.mxu0 0
    %1036 = vmatpush1.bf16.msra.mxu0 0
    %1037 = vmatprep.subr.bf16.mxu0 0
    %1038 = vmatpush1.bf16.msra.mxu0 0
    %1039 = vmatprep.subr.bf16.mxu0 0
    %1040 = vmatpush1.bf16.msra.mxu0 0
    %1041 = vmatprep.subr.bf16.mxu0 0
    %1042 = vmatpush1.bf16.msra.mxu0 0
    %1043 = vmatprep.subr.bf16.mxu0 0
    %1044 = vmatpush1.bf16.msra.mxu0 0
    %1045 = vmatprep.subr.bf16.mxu0 0
    %1046 = vmatpush1.bf16.msra.mxu0 0
    %1047 = vmatprep.subr.bf16.mxu0 0
    %1048 = vmatpush1.bf16.msra.mxu0 0
    %1049 = vmatprep.mubr.bf16.mxu0 0
    %1050 = vmatmul.mubr.bf16.gmra.mrb[0].mxu0 %v967
    %v1051 = vpop.f32.mrb[0].mxu0
    %v1052 = vadd.f32 0.0, %v1051
    %v1053 = vpop.f32.mrb[0].mxu0
    %v1054 = vpop.f32.mrb[0].mxu0
    %v1055 = vpop.f32.mrb[0].mxu0
    %1056 = vdwg.mxu0
    %v1057 = vadd.f32 %v942, %v1052
    %v1058 = vrot.slane %v963, 1
    %v1059 = vsel %vm323, %v964, %v1058
    %v1060 = vpack.c.b16 %v1059, %v1059
    %1062 = vrot.lane.b32.xlu0 %v1001, 96
    %v1063 = vpop.permute.xlu0 %1062
    %1064 = vrot.lane.b32.xlu0 %v1002, 96
    %v1065 = vpop.permute.xlu0 %1064
    %1066 = vrot.lane.b32.xlu0 %v1003, 96
    %v1067 = vpop.permute.xlu0 %1066
    %1068 = vrot.lane.b32.xlu0 %v1004, 96
    %v1069 = vpop.permute.xlu0 %1068
    %1070 = vrot.lane.b32.xlu0 %v1005, 96
    %v1071 = vpop.permute.xlu0 %1070
    %1072 = vrot.lane.b32.xlu0 %v1006, 96
    %v1073 = vpop.permute.xlu0 %1072
    %1074 = vrot.lane.b32.xlu0 %v1007, 96
    %v1075 = vpop.permute.xlu0 %1074
    %1076 = vrot.lane.b32.xlu0 %v1008, 96
    %v1077 = vpop.permute.xlu0 %1076
    %1086 = vmatprep.subr.bf16.mxu0 0
    %1087 = vmatpush1.bf16.msra.mxu0 %v1063
    %1088 = vmatprep.subr.bf16.mxu0 0
    %1089 = vmatpush1.bf16.msra.mxu0 %v1065
    %1090 = vmatprep.subr.bf16.mxu0 0
    %1091 = vmatpush1.bf16.msra.mxu0 %v1067
    %1092 = vmatprep.subr.bf16.mxu0 0
    %1093 = vmatpush1.bf16.msra.mxu0 %v1069
    %1094 = vmatprep.subr.bf16.mxu0 0
    %1095 = vmatpush1.bf16.msra.mxu0 %v1071
    %1096 = vmatprep.subr.bf16.mxu0 0
    %1097 = vmatpush1.bf16.msra.mxu0 %v1073
    %1098 = vmatprep.subr.bf16.mxu0 0
    %1099 = vmatpush1.bf16.msra.mxu0 %v1075
    %1100 = vmatprep.subr.bf16.mxu0 0
    %1101 = vmatpush1.bf16.msra.mxu0 %v1077
    %1102 = vmatprep.subr.bf16.mxu0 0
    %1103 = vmatpush1.bf16.msra.mxu0 0
    %1104 = vmatprep.subr.bf16.mxu0 0
    %1105 = vmatpush1.bf16.msra.mxu0 0
    %1106 = vmatprep.subr.bf16.mxu0 0
    %1107 = vmatpush1.bf16.msra.mxu0 0
    %1108 = vmatprep.subr.bf16.mxu0 0
    %1109 = vmatpush1.bf16.msra.mxu0 0
    %1110 = vmatprep.subr.bf16.mxu0 0
    %1111 = vmatpush1.bf16.msra.mxu0 0
    %1112 = vmatprep.subr.bf16.mxu0 0
    %1113 = vmatpush1.bf16.msra.mxu0 0
    %1114 = vmatprep.subr.bf16.mxu0 0
    %1115 = vmatpush1.bf16.msra.mxu0 0
    %1116 = vmatprep.subr.bf16.mxu0 0
    %1117 = vmatpush1.bf16.msra.mxu0 0
    %1118 = vmatprep.mubr.bf16.mxu0 0
    %1119 = vmatmul.mubr.bf16.gmra.mrb[0].mxu0 %v1060
    %v1120 = vpop.f32.mrb[0].mxu0
    %v1121 = vadd.f32 0.0, %v1120
    %v1122 = vpop.f32.mrb[0].mxu0
    %v1123 = vpop.f32.mrb[0].mxu0
    %v1124 = vpop.f32.mrb[0].mxu0
    %1125 = vdwg.mxu0
    %v1126 = vadd.f32 %v1057, %v1121
    %v1127 = vrot.slane %v963, 2
    %v1128 = vrot.slane %v964, 1
    %v1129 = vsel %vm323, %v1128, %v1127
    %v1130 = vpack.c.b16 %v1129, %v1129
    %1132 = vrot.lane.b32.xlu0 %v1001, 64
    %v1133 = vpop.permute.xlu0 %1132
    %1134 = vrot.lane.b32.xlu0 %v1002, 64
    %v1135 = vpop.permute.xlu0 %1134
    %1136 = vrot.lane.b32.xlu0 %v1003, 64
    %v1137 = vpop.permute.xlu0 %1136
    %1138 = vrot.lane.b32.xlu0 %v1004, 64
    %v1139 = vpop.permute.xlu0 %1138
    %1140 = vrot.lane.b32.xlu0 %v1005, 64
    %v1141 = vpop.permute.xlu0 %1140
    %1142 = vrot.lane.b32.xlu0 %v1006, 64
    %v1143 = vpop.permute.xlu0 %1142
    %1144 = vrot.lane.b32.xlu0 %v1007, 64
    %v1145 = vpop.permute.xlu0 %1144
    %1146 = vrot.lane.b32.xlu0 %v1008, 64
    %v1147 = vpop.permute.xlu0 %1146
    %1156 = vmatprep.subr.bf16.mxu0 0
    %1157 = vmatpush1.bf16.msra.mxu0 %v1133
    %1158 = vmatprep.subr.bf16.mxu0 0
    %1159 = vmatpush1.bf16.msra.mxu0 %v1135
    %1160 = vmatprep.subr.bf16.mxu0 0
    %1161 = vmatpush1.bf16.msra.mxu0 %v1137
    %1162 = vmatprep.subr.bf16.mxu0 0
    %1163 = vmatpush1.bf16.msra.mxu0 %v1139
    %1164 = vmatprep.subr.bf16.mxu0 0
    %1165 = vmatpush1.bf16.msra.mxu0 %v1141
    %1166 = vmatprep.subr.bf16.mxu0 0
    %1167 = vmatpush1.bf16.msra.mxu0 %v1143
    %1168 = vmatprep.subr.bf16.mxu0 0
    %1169 = vmatpush1.bf16.msra.mxu0 %v1145
    %1170 = vmatprep.subr.bf16.mxu0 0
    %1171 = vmatpush1.bf16.msra.mxu0 %v1147
    %1172 = vmatprep.subr.bf16.mxu0 0
    %1173 = vmatpush1.bf16.msra.mxu0 0
    %1174 = vmatprep.subr.bf16.mxu0 0
    %1175 = vmatpush1.bf16.msra.mxu0 0
    %1176 = vmatprep.subr.bf16.mxu0 0
    %1177 = vmatpush1.bf16.msra.mxu0 0
    %1178 = vmatprep.subr.bf16.mxu0 0
    %1179 = vmatpush1.bf16.msra.mxu0 0
    %1180 = vmatprep.subr.bf16.mxu0 0
    %1181 = vmatpush1.bf16.msra.mxu0 0
    %1182 = vmatprep.subr.bf16.mxu0 0
    %1183 = vmatpush1.bf16.msra.mxu0 0
    %1184 = vmatprep.subr.bf16.mxu0 0
    %1185 = vmatpush1.bf16.msra.mxu0 0
    %1186 = vmatprep.subr.bf16.mxu0 0
    %1187 = vmatpush1.bf16.msra.mxu0 0
    %1188 = vmatprep.mubr.bf16.mxu0 0
    %1189 = vmatmul.mubr.bf16.gmra.mrb[0].mxu0 %v1130
    %v1190 = vpop.f32.mrb[0].mxu0
    %v1191 = vadd.f32 0.0, %v1190
    %v1192 = vpop.f32.mrb[0].mxu0
    %v1193 = vpop.f32.mrb[0].mxu0
    %v1194 = vpop.f32.mrb[0].mxu0
    %1195 = vdwg.mxu0
    %v1196 = vadd.f32 %v1126, %v1191
    %v1197 = vrot.slane %v963, 3
    %v1198 = vrot.slane %v964, 2
    %v1199 = vsel %vm323, %v1198, %v1197
    %v1200 = vpack.c.b16 %v1199, %v1199
    %1202 = vrot.lane.b32.xlu0 %v1001, 32
    %v1203 = vpop.permute.xlu0 %1202
    %1204 = vrot.lane.b32.xlu0 %v1002, 32
    %v1205 = vpop.permute.xlu0 %1204
    %1206 = vrot.lane.b32.xlu0 %v1003, 32
    %v1207 = vpop.permute.xlu0 %1206
    %1208 = vrot.lane.b32.xlu0 %v1004, 32
    %v1209 = vpop.permute.xlu0 %1208
    %1210 = vrot.lane.b32.xlu0 %v1005, 32
    %v1211 = vpop.permute.xlu0 %1210
    %1212 = vrot.lane.b32.xlu0 %v1006, 32
    %v1213 = vpop.permute.xlu0 %1212
    %1214 = vrot.lane.b32.xlu0 %v1007, 32
    %v1215 = vpop.permute.xlu0 %1214
    %1216 = vrot.lane.b32.xlu0 %v1008, 32
    %v1217 = vpop.permute.xlu0 %1216
    %1226 = vmatprep.subr.bf16.mxu0 0
    %1227 = vmatpush1.bf16.msra.mxu0 %v1203
    %1228 = vmatprep.subr.bf16.mxu0 0
    %1229 = vmatpush1.bf16.msra.mxu0 %v1205
    %1230 = vmatprep.subr.bf16.mxu0 0
    %1231 = vmatpush1.bf16.msra.mxu0 %v1207
    %1232 = vmatprep.subr.bf16.mxu0 0
    %1233 = vmatpush1.bf16.msra.mxu0 %v1209
    %1234 = vmatprep.subr.bf16.mxu0 0
    %1235 = vmatpush1.bf16.msra.mxu0 %v1211
    %1236 = vmatprep.subr.bf16.mxu0 0
    %1237 = vmatpush1.bf16.msra.mxu0 %v1213
    %1238 = vmatprep.subr.bf16.mxu0 0
    %1239 = vmatpush1.bf16.msra.mxu0 %v1215
    %1240 = vmatprep.subr.bf16.mxu0 0
    %1241 = vmatpush1.bf16.msra.mxu0 %v1217
    %1242 = vmatprep.subr.bf16.mxu0 0
    %1243 = vmatpush1.bf16.msra.mxu0 0
    %1244 = vmatprep.subr.bf16.mxu0 0
    %1245 = vmatpush1.bf16.msra.mxu0 0
    %1246 = vmatprep.subr.bf16.mxu0 0
    %1247 = vmatpush1.bf16.msra.mxu0 0
    %1248 = vmatprep.subr.bf16.mxu0 0
    %1249 = vmatpush1.bf16.msra.mxu0 0
    %1250 = vmatprep.subr.bf16.mxu0 0
    %1251 = vmatpush1.bf16.msra.mxu0 0
    %1252 = vmatprep.subr.bf16.mxu0 0
    %1253 = vmatpush1.bf16.msra.mxu0 0
    %1254 = vmatprep.subr.bf16.mxu0 0
    %1255 = vmatpush1.bf16.msra.mxu0 0
    %1256 = vmatprep.subr.bf16.mxu0 0
    %1257 = vmatpush1.bf16.msra.mxu0 0
    %1258 = vmatprep.mubr.bf16.mxu0 0
    %1259 = vmatmul.mubr.bf16.gmra.mrb[0].mxu0 %v1200
    %v1260 = vpop.f32.mrb[0].mxu0
    %v1261 = vadd.f32 0.0, %v1260
    %v1262 = vpop.f32.mrb[0].mxu0
    %v1263 = vpop.f32.mrb[0].mxu0
    %v1264 = vpop.f32.mrb[0].mxu0
    %1265 = vdwg.mxu0
    %v1266 = vadd.f32 %v1196, %v1261
    %v1267 = vld [vmem:[%s3 + $0xc] sm:$0xf]
    %v1268 = vld [vmem:[%s3 + $0x1c] sm:$0xf]
    %v1269 = vld [vmem:[%s3 + $0x2c] sm:$0xf]
    %v1270 = vld [vmem:[%s3 + $0x3c] sm:$0xf]
    %v1271 = vld [vmem:[%s3 + $0x4c] sm:$0xf]
    %v1272 = vld [vmem:[%s3 + $0x5c] sm:$0xf]
    %v1273 = vld [vmem:[%s3 + $0x6c] sm:$0xf]
    %v1274 = vld [vmem:[%s3 + $0x7c] sm:$0xf]
    %v1275 = vld [vmem:[%s3 + $0x8c] sm:$0xf]
    %v1276 = vld [vmem:[%s3 + $0x9c] sm:$0xf]
    %v1277 = vld [vmem:[%s3 + $0xac] sm:$0xf]
    %v1278 = vld [vmem:[%s3 + $0xbc] sm:$0xf]
    %v1279 = vld [vmem:[%s3 + $0xcc] sm:$0xf]
    %v1280 = vld [vmem:[%s3 + $0xdc] sm:$0xf]
    %v1281 = vld [vmem:[%s3 + $0xec] sm:$0xf]
    %v1282 = vld [vmem:[%s3 + $0xfc] sm:$0xf]
    %v1283 = vrot.slane %v963, 4
    %v1284 = vrot.slane %v964, 3
    %v1285 = vsel %vm323, %v1284, %v1283
    %v1286 = vpack.c.b16 %v1285, %v1285
    %v1304 = vunpack.c.l.b16 %v1267
    %v1305 = vunpack.c.l.b16 %v1268
    %v1306 = vunpack.c.l.b16 %v1269
    %v1307 = vunpack.c.l.b16 %v1270
    %v1308 = vunpack.c.l.b16 %v1271
    %v1309 = vunpack.c.l.b16 %v1272
    %v1310 = vunpack.c.l.b16 %v1273
    %v1311 = vunpack.c.l.b16 %v1274
    %v1312 = vunpack.c.l.b16 %v1275
    %v1313 = vunpack.c.l.b16 %v1276
    %v1314 = vunpack.c.l.b16 %v1277
    %v1315 = vunpack.c.l.b16 %v1278
    %v1316 = vunpack.c.l.b16 %v1279
    %v1317 = vunpack.c.l.b16 %v1280
    %v1318 = vunpack.c.l.b16 %v1281
    %v1319 = vunpack.c.l.b16 %v1282
    %v1320 = vpack.c.b16 %v1305, %v1304
    %v1321 = vpack.c.b16 %v1307, %v1306
    %v1322 = vpack.c.b16 %v1309, %v1308
    %v1323 = vpack.c.b16 %v1311, %v1310
    %v1324 = vpack.c.b16 %v1313, %v1312
    %v1325 = vpack.c.b16 %v1315, %v1314
    %v1326 = vpack.c.b16 %v1317, %v1316
    %v1327 = vpack.c.b16 %v1319, %v1318
    %1336 = vmatprep.subr.bf16.mxu0 0
    %1337 = vmatpush1.bf16.msra.mxu0 %v1320
    %1338 = vmatprep.subr.bf16.mxu0 0
    %1339 = vmatpush1.bf16.msra.mxu0 %v1321
    %1340 = vmatprep.subr.bf16.mxu0 0
    %1341 = vmatpush1.bf16.msra.mxu0 %v1322
    %1342 = vmatprep.subr.bf16.mxu0 0
    %1343 = vmatpush1.bf16.msra.mxu0 %v1323
    %1344 = vmatprep.subr.bf16.mxu0 0
    %1345 = vmatpush1.bf16.msra.mxu0 %v1324
    %1346 = vmatprep.subr.bf16.mxu0 0
    %1347 = vmatpush1.bf16.msra.mxu0 %v1325
    %1348 = vmatprep.subr.bf16.mxu0 0
    %1349 = vmatpush1.bf16.msra.mxu0 %v1326
    %1350 = vmatprep.subr.bf16.mxu0 0
    %1351 = vmatpush1.bf16.msra.mxu0 %v1327
    %1352 = vmatprep.subr.bf16.mxu0 0
    %1353 = vmatpush1.bf16.msra.mxu0 0
    %1354 = vmatprep.subr.bf16.mxu0 0
    %1355 = vmatpush1.bf16.msra.mxu0 0
    %1356 = vmatprep.subr.bf16.mxu0 0
    %1357 = vmatpush1.bf16.msra.mxu0 0
    %1358 = vmatprep.subr.bf16.mxu0 0
    %1359 = vmatpush1.bf16.msra.mxu0 0
    %1360 = vmatprep.subr.bf16.mxu0 0
    %1361 = vmatpush1.bf16.msra.mxu0 0
    %1362 = vmatprep.subr.bf16.mxu0 0
    %1363 = vmatpush1.bf16.msra.mxu0 0
    %1364 = vmatprep.subr.bf16.mxu0 0
    %1365 = vmatpush1.bf16.msra.mxu0 0
    %1366 = vmatprep.subr.bf16.mxu0 0
    %1367 = vmatpush1.bf16.msra.mxu0 0
    %1368 = vmatprep.mubr.bf16.mxu0 0
    %1369 = vmatmul.mubr.bf16.gmra.mrb[0].mxu0 %v1286
    %v1370 = vpop.f32.mrb[0].mxu0
    %v1371 = vadd.f32 0.0, %v1370
    %v1372 = vpop.f32.mrb[0].mxu0
    %v1373 = vpop.f32.mrb[0].mxu0
    %v1374 = vpop.f32.mrb[0].mxu0
    %1375 = vdwg.mxu0
    %v1376 = vadd.f32 %v1266, %v1371
    %v1377 = vrot.slane %v963, 5
    %v1378 = vrot.slane %v964, 4
    %v1379 = vsel %vm323, %v1378, %v1377
    %v1380 = vpack.c.b16 %v1379, %v1379
    %1382 = vrot.lane.b32.xlu0 %v1320, 96
    %v1383 = vpop.permute.xlu0 %1382
    %1384 = vrot.lane.b32.xlu0 %v1321, 96
    %v1385 = vpop.permute.xlu0 %1384
    %1386 = vrot.lane.b32.xlu0 %v1322, 96
    %v1387 = vpop.permute.xlu0 %1386
    %1388 = vrot.lane.b32.xlu0 %v1323, 96
    %v1389 = vpop.permute.xlu0 %1388
    %1390 = vrot.lane.b32.xlu0 %v1324, 96
    %v1391 = vpop.permute.xlu0 %1390
    %1392 = vrot.lane.b32.xlu0 %v1325, 96
    %v1393 = vpop.permute.xlu0 %1392
    %1394 = vrot.lane.b32.xlu0 %v1326, 96
    %v1395 = vpop.permute.xlu0 %1394
    %1396 = vrot.lane.b32.xlu0 %v1327, 96
    %v1397 = vpop.permute.xlu0 %1396
    %1406 = vmatprep.subr.bf16.mxu0 0
    %1407 = vmatpush1.bf16.msra.mxu0 %v1383
    %1408 = vmatprep.subr.bf16.mxu0 0
    %1409 = vmatpush1.bf16.msra.mxu0 %v1385
    %1410 = vmatprep.subr.bf16.mxu0 0
    %1411 = vmatpush1.bf16.msra.mxu0 %v1387
    %1412 = vmatprep.subr.bf16.mxu0 0
    %1413 = vmatpush1.bf16.msra.mxu0 %v1389
    %1414 = vmatprep.subr.bf16.mxu0 0
    %1415 = vmatpush1.bf16.msra.mxu0 %v1391
    %1416 = vmatprep.subr.bf16.mxu0 0
    %1417 = vmatpush1.bf16.msra.mxu0 %v1393
    %1418 = vmatprep.subr.bf16.mxu0 0
    %1419 = vmatpush1.bf16.msra.mxu0 %v1395
    %1420 = vmatprep.subr.bf16.mxu0 0
    %1421 = vmatpush1.bf16.msra.mxu0 %v1397
    %1422 = vmatprep.subr.bf16.mxu0 0
    %1423 = vmatpush1.bf16.msra.mxu0 0
    %1424 = vmatprep.subr.bf16.mxu0 0
    %1425 = vmatpush1.bf16.msra.mxu0 0
    %1426 = vmatprep.subr.bf16.mxu0 0
    %1427 = vmatpush1.bf16.msra.mxu0 0
    %1428 = vmatprep.subr.bf16.mxu0 0
    %1429 = vmatpush1.bf16.msra.mxu0 0
    %1430 = vmatprep.subr.bf16.mxu0 0
    %1431 = vmatpush1.bf16.msra.mxu0 0
    %1432 = vmatprep.subr.bf16.mxu0 0
    %1433 = vmatpush1.bf16.msra.mxu0 0
    %1434 = vmatprep.subr.bf16.mxu0 0
    %1435 = vmatpush1.bf16.msra.mxu0 0
    %1436 = vmatprep.subr.bf16.mxu0 0
    %1437 = vmatpush1.bf16.msra.mxu0 0
    %1438 = vmatprep.mubr.bf16.mxu0 0
    %1439 = vmatmul.mubr.bf16.gmra.mrb[0].mxu0 %v1380
    %v1440 = vpop.f32.mrb[0].mxu0
    %v1441 = vadd.f32 0.0, %v1440
    %v1442 = vpop.f32.mrb[0].mxu0
    %v1443 = vpop.f32.mrb[0].mxu0
    %v1444 = vpop.f32.mrb[0].mxu0
    %1445 = vdwg.mxu0
    %v1446 = vadd.f32 %v1376, %v1441
    %v1447 = vrot.slane %v963, 6
    %v1448 = vrot.slane %v964, 5
    %v1449 = vsel %vm323, %v1448, %v1447
    %v1450 = vpack.c.b16 %v1449, %v1449
    %1452 = vrot.lane.b32.xlu0 %v1320, 64
    %v1453 = vpop.permute.xlu0 %1452
    %1454 = vrot.lane.b32.xlu0 %v1321, 64
    %v1455 = vpop.permute.xlu0 %1454
    %1456 = vrot.lane.b32.xlu0 %v1322, 64
    %v1457 = vpop.permute.xlu0 %1456
    %1458 = vrot.lane.b32.xlu0 %v1323, 64
    %v1459 = vpop.permute.xlu0 %1458
    %1460 = vrot.lane.b32.xlu0 %v1324, 64
    %v1461 = vpop.permute.xlu0 %1460
    %1462 = vrot.lane.b32.xlu0 %v1325, 64
    %v1463 = vpop.permute.xlu0 %1462
    %1464 = vrot.lane.b32.xlu0 %v1326, 64
    %v1465 = vpop.permute.xlu0 %1464
    %1466 = vrot.lane.b32.xlu0 %v1327, 64
    %v1467 = vpop.permute.xlu0 %1466
    %1476 = vmatprep.subr.bf16.mxu0 0
    %1477 = vmatpush1.bf16.msra.mxu0 %v1453
    %1478 = vmatprep.subr.bf16.mxu0 0
    %1479 = vmatpush1.bf16.msra.mxu0 %v1455
    %1480 = vmatprep.subr.bf16.mxu0 0
    %1481 = vmatpush1.bf16.msra.mxu0 %v1457
    %1482 = vmatprep.subr.bf16.mxu0 0
    %1483 = vmatpush1.bf16.msra.mxu0 %v1459
    %1484 = vmatprep.subr.bf16.mxu0 0
    %1485 = vmatpush1.bf16.msra.mxu0 %v1461
    %1486 = vmatprep.subr.bf16.mxu0 0
    %1487 = vmatpush1.bf16.msra.mxu0 %v1463
    %1488 = vmatprep.subr.bf16.mxu0 0
    %1489 = vmatpush1.bf16.msra.mxu0 %v1465
    %1490 = vmatprep.subr.bf16.mxu0 0
    %1491 = vmatpush1.bf16.msra.mxu0 %v1467
    %1492 = vmatprep.subr.bf16.mxu0 0
    %1493 = vmatpush1.bf16.msra.mxu0 0
    %1494 = vmatprep.subr.bf16.mxu0 0
    %1495 = vmatpush1.bf16.msra.mxu0 0
    %1496 = vmatprep.subr.bf16.mxu0 0
    %1497 = vmatpush1.bf16.msra.mxu0 0
    %1498 = vmatprep.subr.bf16.mxu0 0
    %1499 = vmatpush1.bf16.msra.mxu0 0
    %1500 = vmatprep.subr.bf16.mxu0 0
    %1501 = vmatpush1.bf16.msra.mxu0 0
    %1502 = vmatprep.subr.bf16.mxu0 0
    %1503 = vmatpush1.bf16.msra.mxu0 0
    %1504 = vmatprep.subr.bf16.mxu0 0
    %1505 = vmatpush1.bf16.msra.mxu0 0
    %1506 = vmatprep.subr.bf16.mxu0 0
    %1507 = vmatpush1.bf16.msra.mxu0 0
    %1508 = vmatprep.mubr.bf16.mxu0 0
    %1509 = vmatmul.mubr.bf16.gmra.mrb[0].mxu0 %v1450
    %v1510 = vpop.f32.mrb[0].mxu0
    %v1511 = vadd.f32 0.0, %v1510
    %v1512 = vpop.f32.mrb[0].mxu0
    %v1513 = vpop.f32.mrb[0].mxu0
    %v1514 = vpop.f32.mrb[0].mxu0
    %1515 = vdwg.mxu0
    %v1516 = vadd.f32 %v1446, %v1511
    %v1517 = vrot.slane %v963, 7
    %v1518 = vrot.slane %v964, 6
    %v1519 = vsel %vm323, %v1518, %v1517
    %v1520 = vpack.c.b16 %v1519, %v1519
    %1522 = vrot.lane.b32.xlu0 %v1320, 32
    %v1523 = vpop.permute.xlu0 %1522
    %1524 = vrot.lane.b32.xlu0 %v1321, 32
    %v1525 = vpop.permute.xlu0 %1524
    %1526 = vrot.lane.b32.xlu0 %v1322, 32
    %v1527 = vpop.permute.xlu0 %1526
    %1528 = vrot.lane.b32.xlu0 %v1323, 32
    %v1529 = vpop.permute.xlu0 %1528
    %1530 = vrot.lane.b32.xlu0 %v1324, 32
    %v1531 = vpop.permute.xlu0 %1530
    %1532 = vrot.lane.b32.xlu0 %v1325, 32
    %v1533 = vpop.permute.xlu0 %1532
    %1534 = vrot.lane.b32.xlu0 %v1326, 32
    %v1535 = vpop.permute.xlu0 %1534
    %1536 = vrot.lane.b32.xlu0 %v1327, 32
    %v1537 = vpop.permute.xlu0 %1536
    %1546 = vmatprep.subr.bf16.mxu0 0
    %1547 = vmatpush1.bf16.msra.mxu0 %v1523
    %1548 = vmatprep.subr.bf16.mxu0 0
    %1549 = vmatpush1.bf16.msra.mxu0 %v1525
    %1550 = vmatprep.subr.bf16.mxu0 0
    %1551 = vmatpush1.bf16.msra.mxu0 %v1527
    %1552 = vmatprep.subr.bf16.mxu0 0
    %1553 = vmatpush1.bf16.msra.mxu0 %v1529
    %1554 = vmatprep.subr.bf16.mxu0 0
    %1555 = vmatpush1.bf16.msra.mxu0 %v1531
    %1556 = vmatprep.subr.bf16.mxu0 0
    %1557 = vmatpush1.bf16.msra.mxu0 %v1533
    %1558 = vmatprep.subr.bf16.mxu0 0
    %1559 = vmatpush1.bf16.msra.mxu0 %v1535
    %1560 = vmatprep.subr.bf16.mxu0 0
    %1561 = vmatpush1.bf16.msra.mxu0 %v1537
    %1562 = vmatprep.subr.bf16.mxu0 0
    %1563 = vmatpush1.bf16.msra.mxu0 0
    %1564 = vmatprep.subr.bf16.mxu0 0
    %1565 = vmatpush1.bf16.msra.mxu0 0
    %1566 = vmatprep.subr.bf16.mxu0 0
    %1567 = vmatpush1.bf16.msra.mxu0 0
    %1568 = vmatprep.subr.bf16.mxu0 0
    %1569 = vmatpush1.bf16.msra.mxu0 0
    %1570 = vmatprep.subr.bf16.mxu0 0
    %1571 = vmatpush1.bf16.msra.mxu0 0
    %1572 = vmatprep.subr.bf16.mxu0 0
    %1573 = vmatpush1.bf16.msra.mxu0 0
    %1574 = vmatprep.subr.bf16.mxu0 0
    %1575 = vmatpush1.bf16.msra.mxu0 0
    %1576 = vmatprep.subr.bf16.mxu0 0
    %1577 = vmatpush1.bf16.msra.mxu0 0
    %1578 = vmatprep.mubr.bf16.mxu0 0
    %1579 = vmatmul.mubr.bf16.gmra.mrb[0].mxu0 %v1520
    %v1580 = vpop.f32.mrb[0].mxu0
    %v1581 = vadd.f32 0.0, %v1580
    %v1582 = vpop.f32.mrb[0].mxu0
    %v1583 = vpop.f32.mrb[0].mxu0
    %v1584 = vpop.f32.mrb[0].mxu0
    %1585 = vdwg.mxu0
    %v1586 = vadd.f32 %v1516, %v1581
    %v1587 = vld [vmem:[%s4 + $0x20] sm:$0x1]
    %v1588 = vlaneseq
    %v1589 = vshrl.u32 %v1588, 7
    %v1590 = vsub.s32 0, %v1589
    %v1591 = vrot.slane %v1587, %v1590
    %v1592 = vadd.f32 %v1586, %v1591
    %v1593 = vmax.f32 %v1592, 0.0
    %v1594 = vld [vmem:[%s4] sm:$0xff]
    %v1595 = vld [vmem:[%s4 + $0x8] sm:$0xff]
    %v1596 = vld [vmem:[%s4 + $0x10] sm:$0xff]
    %v1597 = vld [vmem:[%s4 + $0x18] sm:$0xff]
    %v1598 = vld [vmem:[%s4 + $0x21] sm:$0x1]
    %v1599 = vlaneseq
    %v1600 = vshrl.u32 %v1599, 7
    %v1601 = vsub.s32 0, %v1600
    %v1602 = vrot.slane %v1598, %v1601
    %vm1603 = vcmask 261120
    %v1605 = vsel %vm1603, %v1593, 0
    %1607 = vmatprep.subr.mxu0 0.0
    %1608 = vmatpush1.msra.mxu0 %v1594
    %1609 = vmatprep.subr.mxu0 0.0
    %1610 = vmatpush1.msra.mxu0 %v1595
    %1611 = vmatprep.subr.mxu0 0.0
    %1612 = vmatpush1.msra.mxu0 %v1596
    %1613 = vmatprep.subr.mxu0 0.0
    %1614 = vmatpush1.msra.mxu0 %v1597
    %1615 = vmatprep.subr.mxu0 0.0
    %1616 = vmatpush1.msra.mxu0 0.0
    %1617 = vmatprep.subr.mxu0 0.0
    %1618 = vmatpush1.msra.mxu0 0.0
    %1619 = vmatprep.subr.mxu0 0.0
    %1620 = vmatpush1.msra.mxu0 0.0
    %1621 = vmatprep.subr.mxu0 0.0
    %1622 = vmatpush1.msra.mxu0 0.0
    %1623 = vmatprep.subr.mxu0 0.0
    %1624 = vmatpush1.msra.mxu0 0.0
    %1625 = vmatprep.subr.mxu0 0.0
    %1626 = vmatpush1.msra.mxu0 0.0
    %1627 = vmatprep.subr.mxu0 0.0
    %1628 = vmatpush1.msra.mxu0 0.0
    %1629 = vmatprep.subr.mxu0 0.0
    %1630 = vmatpush1.msra.mxu0 0.0
    %1631 = vmatprep.subr.mxu0 0.0
    %1632 = vmatpush1.msra.mxu0 0.0
    %1633 = vmatprep.subr.mxu0 0.0
    %1634 = vmatpush1.msra.mxu0 0.0
    %1635 = vmatprep.subr.mxu0 0.0
    %1636 = vmatpush1.msra.mxu0 0.0
    %1637 = vmatprep.subr.mxu0 0.0
    %1638 = vmatpush1.msra.mxu0 0.0
    %1639 = vmatprep.subr.mxu0 0.0
    %1640 = vmatpush1.msra.mxu0 0.0
    %1641 = vmatprep.subr.mxu0 0.0
    %1642 = vmatpush1.msra.mxu0 0.0
    %1643 = vmatprep.subr.mxu0 0.0
    %1644 = vmatpush1.msra.mxu0 0.0
    %1645 = vmatprep.subr.mxu0 0.0
    %1646 = vmatpush1.msra.mxu0 0.0
    %1647 = vmatprep.subr.mxu0 0.0
    %1648 = vmatpush1.msra.mxu0 0.0
    %1649 = vmatprep.subr.mxu0 0.0
    %1650 = vmatpush1.msra.mxu0 0.0
    %1651 = vmatprep.subr.mxu0 0.0
    %1652 = vmatpush1.msra.mxu0 0.0
    %1653 = vmatprep.subr.mxu0 0.0
    %1654 = vmatpush1.msra.mxu0 0.0
    %1655 = vmatprep.subr.mxu0 0.0
    %1656 = vmatpush1.msra.mxu0 0.0
    %1657 = vmatprep.subr.mxu0 0.0
    %1658 = vmatpush1.msra.mxu0 0.0
    %1659 = vmatprep.subr.mxu0 0.0
    %1660 = vmatpush1.msra.mxu0 0.0
    %1661 = vmatprep.subr.mxu0 0.0
    %1662 = vmatpush1.msra.mxu0 0.0
    %1663 = vmatprep.subr.mxu0 0.0
    %1664 = vmatpush1.msra.mxu0 0.0
    %1665 = vmatprep.subr.mxu0 0.0
    %1666 = vmatpush1.msra.mxu0 0.0
    %1667 = vmatprep.subr.mxu0 0.0
    %1668 = vmatpush1.msra.mxu0 0.0
    %1669 = vmatprep.subr.mxu0 0.0
    %1670 = vmatpush1.msra.mxu0 0.0
    %1671 = vmatprep.mubr.f32.mxu0 0.0
    %1672 = vmatmul.mubr.f32.gmra.mrb[0].mxu0 %v1605
    %v1673 = vpop.f32.mrb[0].mxu0
    %v1674 = vadd.f32 %v1602, %v1673
    %v1675 = vpop.f32.mrb[0].mxu0
    %1676 = vdwg.mxu0
    %vm1677 = vcmask 74752
    %v1678 = vsel %vm1677, %v1674, -inf
    %1679 = vmax.xlane.f32.xlu0 %v1678
    %v1680 = vpop.xlane.xlu0 %1679
    %v1681 = vsub.f32 %v1674, %v1680
    %v1682 = vmul.f32 %v1681, 1.442695
    %v1683 = vpow.pop %v1682
    %v1684 = vsel %vm1677, %v1683, 0.0
    %1685 = vadd.xlane.f32.xlu0 %v1684
    %v1686 = vpop.xlane.xlu0 %1685
    %v1687 = vrcp.pop %v1686
    %v1688 = vmul.f32 %v1683, %v1687
    %1689 = vst.msk [vmem:[#allocation2] sm:$0x3] %vm1677, %v1688
    // Predicated region
    $region22: #{aux_classifier_forward.1} parent=1 // pred_check
      _
    $region23: #{aux_classifier_forward.1} parent=1 // pred_check_branch
      %1691 = sbr.rel (0) target = $region25
    $region24: #{aux_classifier_forward.1} parent=1 // pred_region
      %s1693 = ssub.s32 32, 32
      %1694 = vsyncadd [#allocation3], %s1693
      %s1696 = sshll.u32 [#allocation2], 4
      %s1697 = int_to_ptr.vmem [resolvable:$true] %s1696
      %1699 = dma.vmem_to_hbm [thread:$0]  %s1697, 32, %s5, [#allocation3]
    $region25: #{aux_classifier_forward.1} parent=1 // pred_fallthru
      _
    // Predicated region
    $region26: #{aux_classifier_forward.1} parent=1 // pred_check
      _
    $region27: #{aux_classifier_forward.1} parent=1 // pred_check_branch
      %1701 = sbr.rel (0) target = $region29
    $region28: #{aux_classifier_forward.1} parent=1 // pred_region
      %1702 = dma.done [#allocation3], 32
    $region29: #{aux_classifier_forward.1} parent=1 // pred_fallthru
      _
    %1703 = vsyncpa [#allocation3], 1

</llo_original>
